<compile_context>
chip_gen: v5e
topology: v5e:2x2
jax: 0.10.0
libtpu: 0.0.40
codegen_flags: <defaults>
</compile_context>

<pallas_src>
import functools

import jax
import jax.numpy as jnp
from jax.experimental import pallas as pl
from jax.experimental.pallas import tpu as pltpu


def _lstm_fc_kernel(x_ref, wih_ref, whh_ref, b_ref, wfc_ref, bfc_ref, out_ref,
                    xg_ref, *, seq_len, batch_pad, hidden_pad):
    """LSTM recurrence + final Linear, all tensors VMEM-resident.

    x_ref   : (S*Bp, D)        flattened (seq, padded-batch) rows
    wih_ref : (D,  4*Hp)       W_ih^T, gate order (i,f,o,g), lane-padded
    whh_ref : (Hp, 4*Hp)       W_hh^T, gate order (i,f,o,g), lane-padded
    b_ref   : (1,  4*Hp)       b_ih + b_hh, same packing
    wfc_ref : (Hp, horizon)    W_fc^T, row-padded with zeros
    bfc_ref : (1,  horizon)
    out_ref : (Bp, horizon)
    xg_ref  : (S*Bp, 4*Hp)     VMEM scratch for the hoisted input projection
    """
    S, Bp, Hp = seq_len, batch_pad, hidden_pad

    # Hoisted input projection for every timestep at once, bias folded in.
    # Written straight to VMEM scratch so it is never a kernel-long live value.
    # (S*Bp, D) @ (D, 4Hp) + (1, 4Hp)  ->  (S*Bp, 4Hp)
    xg_ref[...] = (jnp.dot(x_ref[...], wih_ref[...],
                           preferred_element_type=jnp.float32)
                   + b_ref[...])

    h = jnp.zeros((Bp, Hp), jnp.float32)
    c = jnp.zeros((Bp, Hp), jnp.float32)

    # Fully unrolled recurrence: S is a small static constant; every slice is
    # static and sublane/lane aligned.  Per-step live set is ~O(Bp x 4Hp)
    # (gates) plus h/c — the big operands (xg, whh) stay in VMEM.
    for t in range(S):
        gates = (xg_ref[t * Bp:(t + 1) * Bp, :]
                 + jnp.dot(h, whh_ref[...],
                           preferred_element_type=jnp.float32))
        # Gate packing is (i, f, o, g): one sigmoid over the contiguous
        # i/f/o lanes, one tanh over g (batched EUP work, not 4 tiny ops).
        sig = jax.nn.sigmoid(gates[:, :3 * Hp])
        g = jnp.tanh(gates[:, 3 * Hp:])
        i = sig[:, 0 * Hp:1 * Hp]
        f = sig[:, 1 * Hp:2 * Hp]
        o = sig[:, 2 * Hp:3 * Hp]
        c = f * c + i * g          # padded lanes: f*0 + i*tanh(0) = 0
        h = o * jnp.tanh(c)        # padded lanes: o*tanh(0) = 0

    out_ref[...] = (jnp.dot(h, wfc_ref[...],
                            preferred_element_type=jnp.float32)
                    + bfc_ref[...])


def prepare_params(params):
    """One-time weight packing (NOT on the per-call path).

    Transposes, reorders gates from PyTorch (i,f,g,o) to (i,f,o,g), zero-pads
    each gate to its own 128-lane block, and fuses b_ih + b_hh.
    """
    w_ih = jnp.asarray(params["w_ih"], jnp.float32)   # (4H, D)
    w_hh = jnp.asarray(params["w_hh"], jnp.float32)   # (4H, H)
    bias = jnp.asarray(params["b_ih"] + params["b_hh"], jnp.float32)  # (4H,)
    w_fc = jnp.asarray(params["w_fc"], jnp.float32)   # (horizon, H)
    b_fc = jnp.asarray(params["b_fc"], jnp.float32)   # (horizon,)

    H = w_hh.shape[1]
    D = w_ih.shape[1]
    horizon = w_fc.shape[0]
    Hp = ((H + 127) // 128) * 128

    order = (0, 1, 3, 2)   # PyTorch (i,f,g,o) -> packed (i,f,o,g)

    def pack(w, in_dim, in_pad):
        # w: (4H, in_dim) -> (in_pad, 4*Hp), transposed per-gate, zero-padded.
        blocks = []
        for k in order:
            blk = w[k * H:(k + 1) * H, :].T                        # (in_dim, H)
            blk = jnp.pad(blk, ((0, in_pad - in_dim), (0, Hp - H)))
            blocks.append(blk)
        return jnp.concatenate(blocks, axis=1)                     # (in_pad, 4Hp)

    wih_p = pack(w_ih, D, D)                                       # (D, 4Hp)
    whh_p = pack(w_hh, H, Hp)                                      # (Hp, 4Hp)

    bias_p = jnp.concatenate(
        [jnp.pad(bias[k * H:(k + 1) * H], (0, Hp - H)) for k in order]
    ).reshape(1, 4 * Hp)

    wfc_p = jnp.pad(w_fc.T, ((0, Hp - H), (0, 0)))                 # (Hp, horizon)
    bfc_p = b_fc.reshape(1, horizon)

    return {"wih": wih_p, "whh": whh_p, "bias": bias_p,
            "wfc": wfc_p, "bfc": bfc_p,
            "H": H, "Hp": Hp, "horizon": horizon}


@jax.jit
def _forward_jit(x, wih, whh, bias, wfc, bfc):
    """Jitted wrapper: layout plumbing fuses with the pallas_call dispatch."""
    B, S, D = x.shape
    Hp = whh.shape[0]
    horizon = wfc.shape[1]
    Bp = ((B + 7) // 8) * 8          # 8-sublane minimum; no extra padding

    x_sbd = jnp.transpose(x, (1, 0, 2)).astype(jnp.float32)        # (S, B, D)
    if Bp != B:
        x_sbd = jnp.pad(x_sbd, ((0, 0), (0, Bp - B), (0, 0)))
    x2d = x_sbd.reshape(S * Bp, D)                                 # (S*Bp, D)

    vmem_spec = pl.BlockSpec(memory_space=pltpu.MemorySpace.VMEM)
    kernel = functools.partial(_lstm_fc_kernel,
                               seq_len=S, batch_pad=Bp, hidden_pad=Hp)

    out = pl.pallas_call(
        kernel,
        out_shape=jax.ShapeDtypeStruct((Bp, horizon), jnp.float32),
        in_specs=[vmem_spec] * 6,
        out_specs=vmem_spec,
        scratch_shapes=[pltpu.VMEM((S * Bp, 4 * Hp), jnp.float32)],
    )(x2d, wih, whh, bias, wfc, bfc)

    return out[:B]


def lstm_roi_regressor_forward(x, prepared):
    """x: (batch, seq, input_dim) float32. Returns (batch, horizon) float32."""
    return _forward_jit(x, prepared["wih"], prepared["whh"], prepared["bias"],
                        prepared["wfc"], prepared["bfc"])


def _reference_forward(x, params):
    """Pure-JAX reference matching torch.nn.LSTM + Linear (unpadded weights)."""
    w_ih, w_hh, b_ih, b_hh, w_fc, b_fc = (
        params["w_ih"], params["w_hh"], params["b_ih"],
        params["b_hh"], params["w_fc"], params["b_fc"])
    B, S, D = x.shape
    H = w_hh.shape[1]
    h = jnp.zeros((B, H), jnp.float32)
    c = jnp.zeros((B, H), jnp.float32)
    for t in range(S):
        gates = x[:, t, :] @ w_ih.T + b_ih + h @ w_hh.T + b_hh
        i = jax.nn.sigmoid(gates[:, 0 * H:1 * H])
        f = jax.nn.sigmoid(gates[:, 1 * H:2 * H])
        g = jnp.tanh(gates[:, 2 * H:3 * H])
        o = jax.nn.sigmoid(gates[:, 3 * H:4 * H])
        c = f * c + i * g
        h = o * jnp.tanh(c)
    return h @ w_fc.T + b_fc


def init_params(key, input_dim, hidden_dim, horizon):
    """Deterministic synthetic init matching nn.LSTM / nn.Linear shapes."""
    ks = jax.random.split(key, 6)
    s = 1.0 / jnp.sqrt(hidden_dim)
    return {
        "w_ih": jax.random.uniform(ks[0], (4 * hidden_dim, input_dim),
                                   jnp.float32, -s, s),
        "w_hh": jax.random.uniform(ks[1], (4 * hidden_dim, hidden_dim),
                                   jnp.float32, -s, s),
        "b_ih": jax.random.uniform(ks[2], (4 * hidden_dim,),
                                   jnp.float32, -s, s),
        "b_hh": jax.random.uniform(ks[3], (4 * hidden_dim,),
                                   jnp.float32, -s, s),
        "w_fc": jax.random.uniform(ks[4], (horizon, hidden_dim),
                                   jnp.float32, -s, s),
        "b_fc": jax.random.uniform(ks[5], (horizon,),
                                   jnp.float32, -s, s),
    }


if __name__ == "__main__":
    batch, seq, input_dim, hidden_dim, horizon = 4, 8, 16, 32, 3

    key = jax.random.PRNGKey(0)
    k_x, k_p = jax.random.split(key)
    x = jax.random.normal(k_x, (batch, seq, input_dim), jnp.float32)
    params = init_params(k_p, input_dim, hidden_dim, horizon)

    prepared = prepare_params(params)          # one-time packing, off hot path

    out = lstm_roi_regressor_forward(x, prepared)
    out = jax.block_until_ready(out)

    ref = _reference_forward(x, params)
    assert out.shape == (batch, horizon)
    assert jnp.allclose(out, ref, rtol=1e-3, atol=1e-3), (out, ref)

    print("KERNEL_OK")
</pallas_src>

<mosaic_0001>
module attributes {stable_mosaic.version = 11 : i64} {
  func.func @_lstm_fc_kernel(%arg0: memref<64x16xf32, #tpu.memory_space<vmem>>, %arg1: memref<16x512xf32, #tpu.memory_space<vmem>>, %arg2: memref<128x512xf32, #tpu.memory_space<vmem>>, %arg3: memref<1x512xf32, #tpu.memory_space<vmem>>, %arg4: memref<128x3xf32, #tpu.memory_space<vmem>>, %arg5: memref<1x3xf32, #tpu.memory_space<vmem>>, %arg6: memref<8x3xf32, #tpu.memory_space<vmem>>, %arg7: memref<64x512xf32, #tpu.memory_space<vmem>>) attributes {dimension_semantics = [], scalar_prefetch = 0 : i64, scratch_operands = 1 : i64, tpu.core_type = #tpu.core_type<tc>} {
    %c0 = arith.constant 0 : index
    %c0_0 = arith.constant 0 : index
    %0 = vector.load %arg0[%c0, %c0_0] : memref<64x16xf32, #tpu.memory_space<vmem>>, vector<64x16xf32>
    %c0_1 = arith.constant 0 : index
    %c0_2 = arith.constant 0 : index
    %1 = vector.load %arg1[%c0_1, %c0_2] : memref<16x512xf32, #tpu.memory_space<vmem>>, vector<16x512xf32>
    %cst = arith.constant dense<0.000000e+00> : vector<64x512xf32>
    %2 = tpu.matmul %0, %1, %cst {dimension_numbers = #tpu.dot_dimension_numbers<[1], [0], [0], [1], [0, 0, 1, 1], [], []>} : vector<64x16xf32>, vector<16x512xf32>, vector<64x512xf32> -> vector<64x512xf32>
    %c0_3 = arith.constant 0 : index
    %c0_4 = arith.constant 0 : index
    %3 = vector.load %arg3[%c0_3, %c0_4] : memref<1x512xf32, #tpu.memory_space<vmem>>, vector<1x512xf32>
    %4 = vector.broadcast %3 : vector<1x512xf32> to vector<64x512xf32>
    %5 = arith.addf %2, %4 : vector<64x512xf32>
    %c0_5 = arith.constant 0 : index
    %c0_6 = arith.constant 0 : index
    %6 = vector.load %arg7[%c0_5, %c0_6] : memref<64x512xf32, #tpu.memory_space<vmem>>, vector<64x512xf32>
    tpu.vector_store %arg7[%c0_5, %c0_6], %5 {strides = array<i32>} : memref<64x512xf32, #tpu.memory_space<vmem>>, vector<64x512xf32>,
    %cst_7 = arith.constant 0.000000e+00 : f32
    %7 = vector.broadcast %cst_7 : f32 to vector<8x128xf32>
    %cst_8 = arith.constant 0.000000e+00 : f32
    %8 = vector.broadcast %cst_8 : f32 to vector<8x128xf32>
    %c0_9 = arith.constant 0 : index
    %c0_10 = arith.constant 0 : index
    %9 = vector.load %arg7[%c0_9, %c0_10] : memref<64x512xf32, #tpu.memory_space<vmem>>, vector<8x512xf32>
    %c0_11 = arith.constant 0 : index
    %c0_12 = arith.constant 0 : index
    %10 = vector.load %arg2[%c0_11, %c0_12] : memref<128x512xf32, #tpu.memory_space<vmem>>, vector<128x512xf32>
    %cst_13 = arith.constant dense<0.000000e+00> : vector<8x512xf32>
    %11 = tpu.matmul %7, %10, %cst_13 {dimension_numbers = #tpu.dot_dimension_numbers<[1], [0], [0], [1], [0, 0, 1, 1], [], []>} : vector<8x128xf32>, vector<128x512xf32>, vector<8x512xf32> -> vector<8x512xf32>
    %12 = arith.addf %9, %11 : vector<8x512xf32>
    %13 = vector.extract_strided_slice %12 {offsets = [0, 0], sizes = [8, 384], strides = [1, 1]} : vector<8x512xf32> to vector<8x384xf32>
    %14 = arith.negf %13 : vector<8x384xf32>
    %15 = math.exp %14 : vector<8x384xf32>
    %cst_14 = arith.constant 1.000000e+00 : f32
    %16 = vector.broadcast %cst_14 : f32 to vector<8x384xf32>
    %17 = arith.addf %16, %15 : vector<8x384xf32>
    %18 = arith.divf %16, %17 : vector<8x384xf32>
    %19 = vector.extract_strided_slice %12 {offsets = [0, 384], sizes = [8, 128], strides = [1, 1]} : vector<8x512xf32> to vector<8x128xf32>
    %20 = math.tanh %19 : vector<8x128xf32>
    %21 = vector.extract_strided_slice %18 {offsets = [0, 0], sizes = [8, 128], strides = [1, 1]} : vector<8x384xf32> to vector<8x128xf32>
    %22 = vector.extract_strided_slice %18 {offsets = [0, 128], sizes = [8, 128], strides = [1, 1]} : vector<8x384xf32> to vector<8x128xf32>
    %23 = vector.extract_strided_slice %18 {offsets = [0, 256], sizes = [8, 128], strides = [1, 1]} : vector<8x384xf32> to vector<8x128xf32>
    %24 = arith.mulf %22, %8 : vector<8x128xf32>
    %25 = arith.mulf %21, %20 : vector<8x128xf32>
    %26 = arith.addf %24, %25 : vector<8x128xf32>
    %27 = math.tanh %26 : vector<8x128xf32>
    %28 = arith.mulf %23, %27 : vector<8x128xf32>
    %c8 = arith.constant 8 : index
    %c0_15 = arith.constant 0 : index
    %29 = vector.load %arg7[%c8, %c0_15] : memref<64x512xf32, #tpu.memory_space<vmem>>, vector<8x512xf32>
    %c0_16 = arith.constant 0 : index
    %c0_17 = arith.constant 0 : index
    %30 = vector.load %arg2[%c0_16, %c0_17] : memref<128x512xf32, #tpu.memory_space<vmem>>, vector<128x512xf32>
    %cst_18 = arith.constant dense<0.000000e+00> : vector<8x512xf32>
    %31 = tpu.matmul %28, %30, %cst_18 {dimension_numbers = #tpu.dot_dimension_numbers<[1], [0], [0], [1], [0, 0, 1, 1], [], []>} : vector<8x128xf32>, vector<128x512xf32>, vector<8x512xf32> -> vector<8x512xf32>
    %32 = arith.addf %29, %31 : vector<8x512xf32>
    %33 = vector.extract_strided_slice %32 {offsets = [0, 0], sizes = [8, 384], strides = [1, 1]} : vector<8x512xf32> to vector<8x384xf32>
    %34 = arith.negf %33 : vector<8x384xf32>
    %35 = math.exp %34 : vector<8x384xf32>
    %cst_19 = arith.constant 1.000000e+00 : f32
    %36 = vector.broadcast %cst_19 : f32 to vector<8x384xf32>
    %37 = arith.addf %36, %35 : vector<8x384xf32>
    %38 = arith.divf %36, %37 : vector<8x384xf32>
    %39 = vector.extract_strided_slice %32 {offsets = [0, 384], sizes = [8, 128], strides = [1, 1]} : vector<8x512xf32> to vector<8x128xf32>
    %40 = math.tanh %39 : vector<8x128xf32>
    %41 = vector.extract_strided_slice %38 {offsets = [0, 0], sizes = [8, 128], strides = [1, 1]} : vector<8x384xf32> to vector<8x128xf32>
    %42 = vector.extract_strided_slice %38 {offsets = [0, 128], sizes = [8, 128], strides = [1, 1]} : vector<8x384xf32> to vector<8x128xf32>
    %43 = vector.extract_strided_slice %38 {offsets = [0, 256], sizes = [8, 128], strides = [1, 1]} : vector<8x384xf32> to vector<8x128xf32>
    %44 = arith.mulf %42, %26 : vector<8x128xf32>
    %45 = arith.mulf %41, %40 : vector<8x128xf32>
    %46 = arith.addf %44, %45 : vector<8x128xf32>
    %47 = math.tanh %46 : vector<8x128xf32>
    %48 = arith.mulf %43, %47 : vector<8x128xf32>
    %c16 = arith.constant 16 : index
    %c0_20 = arith.constant 0 : index
    %49 = vector.load %arg7[%c16, %c0_20] : memref<64x512xf32, #tpu.memory_space<vmem>>, vector<8x512xf32>
    %c0_21 = arith.constant 0 : index
    %c0_22 = arith.constant 0 : index
    %50 = vector.load %arg2[%c0_21, %c0_22] : memref<128x512xf32, #tpu.memory_space<vmem>>, vector<128x512xf32>
    %cst_23 = arith.constant dense<0.000000e+00> : vector<8x512xf32>
    %51 = tpu.matmul %48, %50, %cst_23 {dimension_numbers = #tpu.dot_dimension_numbers<[1], [0], [0], [1], [0, 0, 1, 1], [], []>} : vector<8x128xf32>, vector<128x512xf32>, vector<8x512xf32> -> vector<8x512xf32>
    %52 = arith.addf %49, %51 : vector<8x512xf32>
    %53 = vector.extract_strided_slice %52 {offsets = [0, 0], sizes = [8, 384], strides = [1, 1]} : vector<8x512xf32> to vector<8x384xf32>
    %54 = arith.negf %53 : vector<8x384xf32>
    %55 = math.exp %54 : vector<8x384xf32>
    %cst_24 = arith.constant 1.000000e+00 : f32
    %56 = vector.broadcast %cst_24 : f32 to vector<8x384xf32>
    %57 = arith.addf %56, %55 : vector<8x384xf32>
    %58 = arith.divf %56, %57 : vector<8x384xf32>
    %59 = vector.extract_strided_slice %52 {offsets = [0, 384], sizes = [8, 128], strides = [1, 1]} : vector<8x512xf32> to vector<8x128xf32>
    %60 = math.tanh %59 : vector<8x128xf32>
    %61 = vector.extract_strided_slice %58 {offsets = [0, 0], sizes = [8, 128], strides = [1, 1]} : vector<8x384xf32> to vector<8x128xf32>
    %62 = vector.extract_strided_slice %58 {offsets = [0, 128], sizes = [8, 128], strides = [1, 1]} : vector<8x384xf32> to vector<8x128xf32>
    %63 = vector.extract_strided_slice %58 {offsets = [0, 256], sizes = [8, 128], strides = [1, 1]} : vector<8x384xf32> to vector<8x128xf32>
    %64 = arith.mulf %62, %46 : vector<8x128xf32>
    %65 = arith.mulf %61, %60 : vector<8x128xf32>
    %66 = arith.addf %64, %65 : vector<8x128xf32>
    %67 = math.tanh %66 : vector<8x128xf32>
    %68 = arith.mulf %63, %67 : vector<8x128xf32>
    %c24 = arith.constant 24 : index
    %c0_25 = arith.constant 0 : index
    %69 = vector.load %arg7[%c24, %c0_25] : memref<64x512xf32, #tpu.memory_space<vmem>>, vector<8x512xf32>
    %c0_26 = arith.constant 0 : index
    %c0_27 = arith.constant 0 : index
    %70 = vector.load %arg2[%c0_26, %c0_27] : memref<128x512xf32, #tpu.memory_space<vmem>>, vector<128x512xf32>
    %cst_28 = arith.constant dense<0.000000e+00> : vector<8x512xf32>
    %71 = tpu.matmul %68, %70, %cst_28 {dimension_numbers = #tpu.dot_dimension_numbers<[1], [0], [0], [1], [0, 0, 1, 1], [], []>} : vector<8x128xf32>, vector<128x512xf32>, vector<8x512xf32> -> vector<8x512xf32>
    %72 = arith.addf %69, %71 : vector<8x512xf32>
    %73 = vector.extract_strided_slice %72 {offsets = [0, 0], sizes = [8, 384], strides = [1, 1]} : vector<8x512xf32> to vector<8x384xf32>
    %74 = arith.negf %73 : vector<8x384xf32>
    %75 = math.exp %74 : vector<8x384xf32>
    %cst_29 = arith.constant 1.000000e+00 : f32
    %76 = vector.broadcast %cst_29 : f32 to vector<8x384xf32>
    %77 = arith.addf %76, %75 : vector<8x384xf32>
    %78 = arith.divf %76, %77 : vector<8x384xf32>
    %79 = vector.extract_strided_slice %72 {offsets = [0, 384], sizes = [8, 128], strides = [1, 1]} : vector<8x512xf32> to vector<8x128xf32>
    %80 = math.tanh %79 : vector<8x128xf32>
    %81 = vector.extract_strided_slice %78 {offsets = [0, 0], sizes = [8, 128], strides = [1, 1]} : vector<8x384xf32> to vector<8x128xf32>
    %82 = vector.extract_strided_slice %78 {offsets = [0, 128], sizes = [8, 128], strides = [1, 1]} : vector<8x384xf32> to vector<8x128xf32>
    %83 = vector.extract_strided_slice %78 {offsets = [0, 256], sizes = [8, 128], strides = [1, 1]} : vector<8x384xf32> to vector<8x128xf32>
    %84 = arith.mulf %82, %66 : vector<8x128xf32>
    %85 = arith.mulf %81, %80 : vector<8x128xf32>
    %86 = arith.addf %84, %85 : vector<8x128xf32>
    %87 = math.tanh %86 : vector<8x128xf32>
    %88 = arith.mulf %83, %87 : vector<8x128xf32>
    %c32 = arith.constant 32 : index
    %c0_30 = arith.constant 0 : index
    %89 = vector.load %arg7[%c32, %c0_30] : memref<64x512xf32, #tpu.memory_space<vmem>>, vector<8x512xf32>
    %c0_31 = arith.constant 0 : index
    %c0_32 = arith.constant 0 : index
    %90 = vector.load %arg2[%c0_31, %c0_32] : memref<128x512xf32, #tpu.memory_space<vmem>>, vector<128x512xf32>
    %cst_33 = arith.constant dense<0.000000e+00> : vector<8x512xf32>
    %91 = tpu.matmul %88, %90, %cst_33 {dimension_numbers = #tpu.dot_dimension_numbers<[1], [0], [0], [1], [0, 0, 1, 1], [], []>} : vector<8x128xf32>, vector<128x512xf32>, vector<8x512xf32> -> vector<8x512xf32>
    %92 = arith.addf %89, %91 : vector<8x512xf32>
    %93 = vector.extract_strided_slice %92 {offsets = [0, 0], sizes = [8, 384], strides = [1, 1]} : vector<8x512xf32> to vector<8x384xf32>
    %94 = arith.negf %93 : vector<8x384xf32>
    %95 = math.exp %94 : vector<8x384xf32>
    %cst_34 = arith.constant 1.000000e+00 : f32
    %96 = vector.broadcast %cst_34 : f32 to vector<8x384xf32>
    %97 = arith.addf %96, %95 : vector<8x384xf32>
    %98 = arith.divf %96, %97 : vector<8x384xf32>
    %99 = vector.extract_strided_slice %92 {offsets = [0, 384], sizes = [8, 128], strides = [1, 1]} : vector<8x512xf32> to vector<8x128xf32>
    %100 = math.tanh %99 : vector<8x128xf32>
    %101 = vector.extract_strided_slice %98 {offsets = [0, 0], sizes = [8, 128], strides = [1, 1]} : vector<8x384xf32> to vector<8x128xf32>
    %102 = vector.extract_strided_slice %98 {offsets = [0, 128], sizes = [8, 128], strides = [1, 1]} : vector<8x384xf32> to vector<8x128xf32>
    %103 = vector.extract_strided_slice %98 {offsets = [0, 256], sizes = [8, 128], strides = [1, 1]} : vector<8x384xf32> to vector<8x128xf32>
    %104 = arith.mulf %102, %86 : vector<8x128xf32>
    %105 = arith.mulf %101, %100 : vector<8x128xf32>
    %106 = arith.addf %104, %105 : vector<8x128xf32>
    %107 = math.tanh %106 : vector<8x128xf32>
    %108 = arith.mulf %103, %107 : vector<8x128xf32>
    %c40 = arith.constant 40 : index
    %c0_35 = arith.constant 0 : index
    %109 = vector.load %arg7[%c40, %c0_35] : memref<64x512xf32, #tpu.memory_space<vmem>>, vector<8x512xf32>
    %c0_36 = arith.constant 0 : index
    %c0_37 = arith.constant 0 : index
    %110 = vector.load %arg2[%c0_36, %c0_37] : memref<128x512xf32, #tpu.memory_space<vmem>>, vector<128x512xf32>
    %cst_38 = arith.constant dense<0.000000e+00> : vector<8x512xf32>
    %111 = tpu.matmul %108, %110, %cst_38 {dimension_numbers = #tpu.dot_dimension_numbers<[1], [0], [0], [1], [0, 0, 1, 1], [], []>} : vector<8x128xf32>, vector<128x512xf32>, vector<8x512xf32> -> vector<8x512xf32>
    %112 = arith.addf %109, %111 : vector<8x512xf32>
    %113 = vector.extract_strided_slice %112 {offsets = [0, 0], sizes = [8, 384], strides = [1, 1]} : vector<8x512xf32> to vector<8x384xf32>
    %114 = arith.negf %113 : vector<8x384xf32>
    %115 = math.exp %114 : vector<8x384xf32>
    %cst_39 = arith.constant 1.000000e+00 : f32
    %116 = vector.broadcast %cst_39 : f32 to vector<8x384xf32>
    %117 = arith.addf %116, %115 : vector<8x384xf32>
    %118 = arith.divf %116, %117 : vector<8x384xf32>
    %119 = vector.extract_strided_slice %112 {offsets = [0, 384], sizes = [8, 128], strides = [1, 1]} : vector<8x512xf32> to vector<8x128xf32>
    %120 = math.tanh %119 : vector<8x128xf32>
    %121 = vector.extract_strided_slice %118 {offsets = [0, 0], sizes = [8, 128], strides = [1, 1]} : vector<8x384xf32> to vector<8x128xf32>
    %122 = vector.extract_strided_slice %118 {offsets = [0, 128], sizes = [8, 128], strides = [1, 1]} : vector<8x384xf32> to vector<8x128xf32>
    %123 = vector.extract_strided_slice %118 {offsets = [0, 256], sizes = [8, 128], strides = [1, 1]} : vector<8x384xf32> to vector<8x128xf32>
    %124 = arith.mulf %122, %106 : vector<8x128xf32>
    %125 = arith.mulf %121, %120 : vector<8x128xf32>
    %126 = arith.addf %124, %125 : vector<8x128xf32>
    %127 = math.tanh %126 : vector<8x128xf32>
    %128 = arith.mulf %123, %127 : vector<8x128xf32>
    %c48 = arith.constant 48 : index
    %c0_40 = arith.constant 0 : index
    %129 = vector.load %arg7[%c48, %c0_40] : memref<64x512xf32, #tpu.memory_space<vmem>>, vector<8x512xf32>
    %c0_41 = arith.constant 0 : index
    %c0_42 = arith.constant 0 : index
    %130 = vector.load %arg2[%c0_41, %c0_42] : memref<128x512xf32, #tpu.memory_space<vmem>>, vector<128x512xf32>
    %cst_43 = arith.constant dense<0.000000e+00> : vector<8x512xf32>
    %131 = tpu.matmul %128, %130, %cst_43 {dimension_numbers = #tpu.dot_dimension_numbers<[1], [0], [0], [1], [0, 0, 1, 1], [], []>} : vector<8x128xf32>, vector<128x512xf32>, vector<8x512xf32> -> vector<8x512xf32>
    %132 = arith.addf %129, %131 : vector<8x512xf32>
    %133 = vector.extract_strided_slice %132 {offsets = [0, 0], sizes = [8, 384], strides = [1, 1]} : vector<8x512xf32> to vector<8x384xf32>
    %134 = arith.negf %133 : vector<8x384xf32>
    %135 = math.exp %134 : vector<8x384xf32>
    %cst_44 = arith.constant 1.000000e+00 : f32
    %136 = vector.broadcast %cst_44 : f32 to vector<8x384xf32>
    %137 = arith.addf %136, %135 : vector<8x384xf32>
    %138 = arith.divf %136, %137 : vector<8x384xf32>
    %139 = vector.extract_strided_slice %132 {offsets = [0, 384], sizes = [8, 128], strides = [1, 1]} : vector<8x512xf32> to vector<8x128xf32>
    %140 = math.tanh %139 : vector<8x128xf32>
    %141 = vector.extract_strided_slice %138 {offsets = [0, 0], sizes = [8, 128], strides = [1, 1]} : vector<8x384xf32> to vector<8x128xf32>
    %142 = vector.extract_strided_slice %138 {offsets = [0, 128], sizes = [8, 128], strides = [1, 1]} : vector<8x384xf32> to vector<8x128xf32>
    %143 = vector.extract_strided_slice %138 {offsets = [0, 256], sizes = [8, 128], strides = [1, 1]} : vector<8x384xf32> to vector<8x128xf32>
    %144 = arith.mulf %142, %126 : vector<8x128xf32>
    %145 = arith.mulf %141, %140 : vector<8x128xf32>
    %146 = arith.addf %144, %145 : vector<8x128xf32>
    %147 = math.tanh %146 : vector<8x128xf32>
    %148 = arith.mulf %143, %147 : vector<8x128xf32>
    %c56 = arith.constant 56 : index
    %c0_45 = arith.constant 0 : index
    %149 = vector.load %arg7[%c56, %c0_45] : memref<64x512xf32, #tpu.memory_space<vmem>>, vector<8x512xf32>
    %c0_46 = arith.constant 0 : index
    %c0_47 = arith.constant 0 : index
    %150 = vector.load %arg2[%c0_46, %c0_47] : memref<128x512xf32, #tpu.memory_space<vmem>>, vector<128x512xf32>
    %cst_48 = arith.constant dense<0.000000e+00> : vector<8x512xf32>
    %151 = tpu.matmul %148, %150, %cst_48 {dimension_numbers = #tpu.dot_dimension_numbers<[1], [0], [0], [1], [0, 0, 1, 1], [], []>} : vector<8x128xf32>, vector<128x512xf32>, vector<8x512xf32> -> vector<8x512xf32>
    %152 = arith.addf %149, %151 : vector<8x512xf32>
    %153 = vector.extract_strided_slice %152 {offsets = [0, 0], sizes = [8, 384], strides = [1, 1]} : vector<8x512xf32> to vector<8x384xf32>
    %154 = arith.negf %153 : vector<8x384xf32>
    %155 = math.exp %154 : vector<8x384xf32>
    %cst_49 = arith.constant 1.000000e+00 : f32
    %156 = vector.broadcast %cst_49 : f32 to vector<8x384xf32>
    %157 = arith.addf %156, %155 : vector<8x384xf32>
    %158 = arith.divf %156, %157 : vector<8x384xf32>
    %159 = vector.extract_strided_slice %152 {offsets = [0, 384], sizes = [8, 128], strides = [1, 1]} : vector<8x512xf32> to vector<8x128xf32>
    %160 = math.tanh %159 : vector<8x128xf32>
    %161 = vector.extract_strided_slice %158 {offsets = [0, 0], sizes = [8, 128], strides = [1, 1]} : vector<8x384xf32> to vector<8x128xf32>
    %162 = vector.extract_strided_slice %158 {offsets = [0, 128], sizes = [8, 128], strides = [1, 1]} : vector<8x384xf32> to vector<8x128xf32>
    %163 = vector.extract_strided_slice %158 {offsets = [0, 256], sizes = [8, 128], strides = [1, 1]} : vector<8x384xf32> to vector<8x128xf32>
    %164 = arith.mulf %162, %146 : vector<8x128xf32>
    %165 = arith.mulf %161, %160 : vector<8x128xf32>
    %166 = arith.addf %164, %165 : vector<8x128xf32>
    %167 = math.tanh %166 : vector<8x128xf32>
    %168 = arith.mulf %163, %167 : vector<8x128xf32>
    %c0_50 = arith.constant 0 : index
    %c0_51 = arith.constant 0 : index
    %169 = vector.load %arg4[%c0_50, %c0_51] : memref<128x3xf32, #tpu.memory_space<vmem>>, vector<128x3xf32>
    %cst_52 = arith.constant dense<0.000000e+00> : vector<8x3xf32>
    %170 = tpu.matmul %168, %169, %cst_52 {dimension_numbers = #tpu.dot_dimension_numbers<[1], [0], [0], [1], [0, 0, 1, 1], [], []>} : vector<8x128xf32>, vector<128x3xf32>, vector<8x3xf32> -> vector<8x3xf32>
    %c0_53 = arith.constant 0 : index
    %c0_54 = arith.constant 0 : index
    %171 = vector.load %arg5[%c0_53, %c0_54] : memref<1x3xf32, #tpu.memory_space<vmem>>, vector<1x3xf32>
    %172 = vector.broadcast %171 : vector<1x3xf32> to vector<8x3xf32>
    %173 = arith.addf %170, %172 : vector<8x3xf32>
    %c0_55 = arith.constant 0 : index
    %c0_56 = arith.constant 0 : index
    %174 = vector.load %arg6[%c0_55, %c0_56] : memref<8x3xf32, #tpu.memory_space<vmem>>, vector<8x3xf32>
    tpu.vector_store %arg6[%c0_55, %c0_56], %173 {strides = array<i32>} : memref<8x3xf32, #tpu.memory_space<vmem>>, vector<8x3xf32>,
    return
  }
}

</mosaic_0001>

<llo_original>
// kernel: _forward_jit.1
$region0: #{_forward_jit.1}
  #allocation0 [shape = 'u32[]', space=smem, size = 0x4, offset = 0x4, fixed_abs, tag = 'smem constant byte address 0x4 - core index']
  #allocation1 [shape = 'u32[72,128]{1,0:T(1,128)}', space=vmem, size = 0x9000, scoped, tag = 'internal scratch']
  #allocation2 [shape = 'f32[64,512]{1,0:T(8,128)}', space=vmem, size = 0x20000, scoped, tag = 'scratch operand']
  %s0 = inlined_call_operand.vmem [shape: f32[64,16], index: 0, kind: input, shape index: {}]
  %s1 = inlined_call_operand.vmem [shape: f32[16,512], index: 1, kind: input, shape index: {}]
  %s2 = inlined_call_operand.hbm [shape: f32[128,512], index: 2, kind: input, shape index: {}]
  %s3 = inlined_call_operand.vmem [shape: f32[1,512], index: 3, kind: input, shape index: {}]
  %s4 = inlined_call_operand.vmem [shape: f32[128,3], index: 4, kind: input, shape index: {}]
  %s5 = inlined_call_operand.vmem [shape: f32[1,3], index: 5, kind: input, shape index: {}]
  %s6 = inlined_call_operand.vmem [shape: f32[8,3], index: 6, kind: output, shape index: {}]
  %s7 = sld [smem:[#allocation0]]
  $region38: #{_forward_jit.1} parent=0
    _
  %s9 = ssub.s32 1, %s7
  %s10 = scalar_select 0, %s9, %s7
  $region1: #{_forward_jit.1} parent=0
    #allocation3 [shape = 'u8[262144]{0}', space=vmem, size = 0x40000, scoped, tag = 'input window, operand 2, single buffered']
    #allocation4 [shape = 's32[1]{0}', space=sflag, size = 0x4, scoped, tag = 'scoped memory for _forward_jit.1']
    %11 = vsyncpa [#allocation4], 0
    // Predicated region
    $region2: #{_forward_jit.1} parent=1 // pred_check
      _
    $region3: #{_forward_jit.1} parent=1 // pred_check_branch
      %13 = sbr.rel (0) target = $region5
    $region4: #{_forward_jit.1} parent=1 // pred_region
      _
    $region5: #{_forward_jit.1} parent=1 // pred_fallthru
      _
    // Predicated region
    $region6: #{_forward_jit.1} parent=1 // pred_check
      _
    $region7: #{_forward_jit.1} parent=1 // pred_check_branch
      %15 = sbr.rel (0) target = $region9
    $region8: #{_forward_jit.1} parent=1 // pred_region
      _
    $region9: #{_forward_jit.1} parent=1 // pred_fallthru
      _
    // Predicated region
    $region10: #{_forward_jit.1} parent=1 // pred_check
      _
    $region11: #{_forward_jit.1} parent=1 // pred_check_branch
      %17 = sbr.rel (0) target = $region13
    $region12: #{_forward_jit.1} parent=1 // pred_region
      %19 = vsyncadd [#allocation4], 0
      %s20 = sshll.u32 %s2, 4
      %s21 = int_to_ptr.hbm [resolvable:$true] %s20
      %s22 = sshll.u32 [#allocation3], 4
      %s23 = int_to_ptr.vmem [resolvable:$true] %s22
      %28 = dma.hbm_to_vmem [thread:$0]  %s21, 8192, %s23, [#allocation4], 512, 512, 32
    $region13: #{_forward_jit.1} parent=1 // pred_fallthru
      _
    // Predicated region
    $region14: #{_forward_jit.1} parent=1 // pred_check
      _
    $region15: #{_forward_jit.1} parent=1 // pred_check_branch
      %30 = sbr.rel (0) target = $region17
    $region16: #{_forward_jit.1} parent=1 // pred_region
      _
    $region17: #{_forward_jit.1} parent=1 // pred_fallthru
      _
    // Predicated region
    $region18: #{_forward_jit.1} parent=1 // pred_check
      _
    $region19: #{_forward_jit.1} parent=1 // pred_check_branch
      %32 = sbr.rel (0) target = $region21
    $region20: #{_forward_jit.1} parent=1 // pred_region
      _
    $region21: #{_forward_jit.1} parent=1 // pred_fallthru
      _
    // Predicated region
    $region22: #{_forward_jit.1} parent=1 // pred_check
      _
    $region23: #{_forward_jit.1} parent=1 // pred_check_branch
      %34 = sbr.rel (0) target = $region25
    $region24: #{_forward_jit.1} parent=1 // pred_region
      _
    $region25: #{_forward_jit.1} parent=1 // pred_fallthru
      _
    // Predicated region
    $region26: #{_forward_jit.1} parent=1 // pred_check
      _
    $region27: #{_forward_jit.1} parent=1 // pred_check_branch
      %36 = sbr.rel (0) target = $region29
    $region28: #{_forward_jit.1} parent=1 // pred_region
      %38 = dma.done [#allocation4], 8192
    $region29: #{_forward_jit.1} parent=1 // pred_fallthru
      _
    %v39 = vld [vmem:[%s0] sm:$0xff]
    %v40 = vld [vmem:[%s0 + $0x8] sm:$0xff]
    %v41 = vld [vmem:[%s0 + $0x10] sm:$0xff]
    %v42 = vld [vmem:[%s0 + $0x18] sm:$0xff]
    %v43 = vld [vmem:[%s0 + $0x20] sm:$0xff]
    %v44 = vld [vmem:[%s0 + $0x28] sm:$0xff]
    %v45 = vld [vmem:[%s0 + $0x30] sm:$0xff]
    %v46 = vld [vmem:[%s0 + $0x38] sm:$0xff]
    %v47 = vld [vmem:[%s1] sm:$0xff]
    %v48 = vld [vmem:[%s1 + $0x8] sm:$0xff]
    %v49 = vld [vmem:[%s1 + $0x10] sm:$0xff]
    %v50 = vld [vmem:[%s1 + $0x18] sm:$0xff]
    %v51 = vld [vmem:[%s1 + $0x20] sm:$0xff]
    %v52 = vld [vmem:[%s1 + $0x28] sm:$0xff]
    %v53 = vld [vmem:[%s1 + $0x30] sm:$0xff]
    %v54 = vld [vmem:[%s1 + $0x38] sm:$0xff]
    %v55 = vld [vmem:[%s3] sm:$0xf]
    %v57 = vperm.slane %v55, 0
    %v58 = vperm.slane %v55, 1
    %v59 = vperm.slane %v55, 2
    %v60 = vperm.slane %v55, 3
    %vm65 = vcmask 130048
    %v67 = vsel %vm65, %v39, 0
    %v70 = vsel %vm65, %v40, 0
    %v73 = vsel %vm65, %v41, 0
    %v76 = vsel %vm65, %v42, 0
    %v79 = vsel %vm65, %v43, 0
    %v82 = vsel %vm65, %v44, 0
    %v85 = vsel %vm65, %v45, 0
    %v88 = vsel %vm65, %v46, 0
    %90 = vmatpush.msra.mxu0 0.0
    %91 = vmatpush.msra.mxu0 0.0
    %92 = vmatpush.msra.mxu0 0.0
    %93 = vmatpush.msra.mxu0 0.0
    %94 = vmatpush.msra.mxu0 0.0
    %95 = vmatpush.msra.mxu0 0.0
    %96 = vmatpush.msra.mxu0 0.0
    %97 = vmatpush.msra.mxu0 0.0
    %98 = vmatpush.msra.mxu0 0.0
    %99 = vmatpush.msra.mxu0 0.0
    %100 = vmatpush.msra.mxu0 0.0
    %101 = vmatpush.msra.mxu0 0.0
    %102 = vmatpush.msra.mxu0 0.0
    %103 = vmatpush.msra.mxu0 0.0
    %104 = vmatpush.msra.mxu0 %v51
    %105 = vmatpush.msra.mxu0 %v47
    %106 = vmatmul.f32.gmra.mxu0 %v67
    %v107 = vpop.f32.mrf.mxu0
    %v108 = vadd.f32 %v57, %v107
    %109 = vmatmul.f32.gmra.mxu0 %v70
    %v110 = vpop.f32.mrf.mxu0
    %v111 = vadd.f32 %v57, %v110
    %112 = vmatmul.f32.gmra.mxu0 %v73
    %v113 = vpop.f32.mrf.mxu0
    %v114 = vadd.f32 %v57, %v113
    %115 = vmatmul.f32.gmra.mxu0 %v76
    %v116 = vpop.f32.mrf.mxu0
    %v117 = vadd.f32 %v57, %v116
    %118 = vmatmul.f32.gmra.mxu0 %v79
    %v119 = vpop.f32.mrf.mxu0
    %v120 = vadd.f32 %v57, %v119
    %121 = vmatmul.f32.gmra.mxu0 %v82
    %v122 = vpop.f32.mrf.mxu0
    %v123 = vadd.f32 %v57, %v122
    %124 = vmatmul.f32.gmra.mxu0 %v85
    %v125 = vpop.f32.mrf.mxu0
    %v126 = vadd.f32 %v57, %v125
    %127 = vmatmul.f32.gmra.mxu0 %v88
    %v128 = vpop.f32.mrf.mxu0
    %v129 = vadd.f32 %v57, %v128
    %130 = vdwg.mxu0
    %131 = vmatpush.msra.mxu0 0.0
    %132 = vmatpush.msra.mxu0 0.0
    %133 = vmatpush.msra.mxu0 0.0
    %134 = vmatpush.msra.mxu0 0.0
    %135 = vmatpush.msra.mxu0 0.0
    %136 = vmatpush.msra.mxu0 0.0
    %137 = vmatpush.msra.mxu0 0.0
    %138 = vmatpush.msra.mxu0 0.0
    %139 = vmatpush.msra.mxu0 0.0
    %140 = vmatpush.msra.mxu0 0.0
    %141 = vmatpush.msra.mxu0 0.0
    %142 = vmatpush.msra.mxu0 0.0
    %143 = vmatpush.msra.mxu0 0.0
    %144 = vmatpush.msra.mxu0 0.0
    %145 = vmatpush.msra.mxu0 %v52
    %146 = vmatpush.msra.mxu0 %v48
    %147 = vmatmul.f32.gmra.mxu0 %v67
    %v148 = vpop.f32.mrf.mxu0
    %v149 = vadd.f32 %v58, %v148
    %150 = vmatmul.f32.gmra.mxu0 %v70
    %v151 = vpop.f32.mrf.mxu0
    %v152 = vadd.f32 %v58, %v151
    %153 = vmatmul.f32.gmra.mxu0 %v73
    %v154 = vpop.f32.mrf.mxu0
    %v155 = vadd.f32 %v58, %v154
    %156 = vmatmul.f32.gmra.mxu0 %v76
    %v157 = vpop.f32.mrf.mxu0
    %v158 = vadd.f32 %v58, %v157
    %159 = vmatmul.f32.gmra.mxu0 %v79
    %v160 = vpop.f32.mrf.mxu0
    %v161 = vadd.f32 %v58, %v160
    %162 = vmatmul.f32.gmra.mxu0 %v82
    %v163 = vpop.f32.mrf.mxu0
    %v164 = vadd.f32 %v58, %v163
    %165 = vmatmul.f32.gmra.mxu0 %v85
    %v166 = vpop.f32.mrf.mxu0
    %v167 = vadd.f32 %v58, %v166
    %168 = vmatmul.f32.gmra.mxu0 %v88
    %v169 = vpop.f32.mrf.mxu0
    %v170 = vadd.f32 %v58, %v169
    %171 = vdwg.mxu0
    %172 = vmatpush.msra.mxu0 0.0
    %173 = vmatpush.msra.mxu0 0.0
    %174 = vmatpush.msra.mxu0 0.0
    %175 = vmatpush.msra.mxu0 0.0
    %176 = vmatpush.msra.mxu0 0.0
    %177 = vmatpush.msra.mxu0 0.0
    %178 = vmatpush.msra.mxu0 0.0
    %179 = vmatpush.msra.mxu0 0.0
    %180 = vmatpush.msra.mxu0 0.0
    %181 = vmatpush.msra.mxu0 0.0
    %182 = vmatpush.msra.mxu0 0.0
    %183 = vmatpush.msra.mxu0 0.0
    %184 = vmatpush.msra.mxu0 0.0
    %185 = vmatpush.msra.mxu0 0.0
    %186 = vmatpush.msra.mxu0 %v53
    %187 = vmatpush.msra.mxu0 %v49
    %188 = vmatmul.f32.gmra.mxu0 %v67
    %v189 = vpop.f32.mrf.mxu0
    %v190 = vadd.f32 %v59, %v189
    %191 = vmatmul.f32.gmra.mxu0 %v70
    %v192 = vpop.f32.mrf.mxu0
    %v193 = vadd.f32 %v59, %v192
    %194 = vmatmul.f32.gmra.mxu0 %v73
    %v195 = vpop.f32.mrf.mxu0
    %v196 = vadd.f32 %v59, %v195
    %197 = vmatmul.f32.gmra.mxu0 %v76
    %v198 = vpop.f32.mrf.mxu0
    %v199 = vadd.f32 %v59, %v198
    %200 = vmatmul.f32.gmra.mxu0 %v79
    %v201 = vpop.f32.mrf.mxu0
    %v202 = vadd.f32 %v59, %v201
    %203 = vmatmul.f32.gmra.mxu0 %v82
    %v204 = vpop.f32.mrf.mxu0
    %v205 = vadd.f32 %v59, %v204
    %206 = vmatmul.f32.gmra.mxu0 %v85
    %v207 = vpop.f32.mrf.mxu0
    %v208 = vadd.f32 %v59, %v207
    %209 = vmatmul.f32.gmra.mxu0 %v88
    %v210 = vpop.f32.mrf.mxu0
    %v211 = vadd.f32 %v59, %v210
    %212 = vdwg.mxu0
    %213 = vmatpush.msra.mxu0 0.0
    %214 = vmatpush.msra.mxu0 0.0
    %215 = vmatpush.msra.mxu0 0.0
    %216 = vmatpush.msra.mxu0 0.0
    %217 = vmatpush.msra.mxu0 0.0
    %218 = vmatpush.msra.mxu0 0.0
    %219 = vmatpush.msra.mxu0 0.0
    %220 = vmatpush.msra.mxu0 0.0
    %221 = vmatpush.msra.mxu0 0.0
    %222 = vmatpush.msra.mxu0 0.0
    %223 = vmatpush.msra.mxu0 0.0
    %224 = vmatpush.msra.mxu0 0.0
    %225 = vmatpush.msra.mxu0 0.0
    %226 = vmatpush.msra.mxu0 0.0
    %227 = vmatpush.msra.mxu0 %v54
    %228 = vmatpush.msra.mxu0 %v50
    %229 = vmatmul.f32.gmra.mxu0 %v67
    %v230 = vpop.f32.mrf.mxu0
    %v231 = vadd.f32 %v60, %v230
    %232 = vmatmul.f32.gmra.mxu0 %v70
    %v233 = vpop.f32.mrf.mxu0
    %v234 = vadd.f32 %v60, %v233
    %235 = vmatmul.f32.gmra.mxu0 %v73
    %v236 = vpop.f32.mrf.mxu0
    %v237 = vadd.f32 %v60, %v236
    %238 = vmatmul.f32.gmra.mxu0 %v76
    %v239 = vpop.f32.mrf.mxu0
    %v240 = vadd.f32 %v60, %v239
    %241 = vmatmul.f32.gmra.mxu0 %v79
    %v242 = vpop.f32.mrf.mxu0
    %v243 = vadd.f32 %v60, %v242
    %244 = vmatmul.f32.gmra.mxu0 %v82
    %v245 = vpop.f32.mrf.mxu0
    %v246 = vadd.f32 %v60, %v245
    %247 = vmatmul.f32.gmra.mxu0 %v85
    %v248 = vpop.f32.mrf.mxu0
    %v249 = vadd.f32 %v60, %v248
    %250 = vmatmul.f32.gmra.mxu0 %v88
    %v251 = vpop.f32.mrf.mxu0
    %v252 = vadd.f32 %v60, %v251
    %253 = vdwg.mxu0
    %254 = vst [vmem:[#allocation2] sm:$0xff] %v108
    %255 = vst [vmem:[#allocation2 + $0x8] sm:$0xff] %v149
    %256 = vst [vmem:[#allocation2 + $0x10] sm:$0xff] %v190
    %257 = vst [vmem:[#allocation2 + $0x18] sm:$0xff] %v231
    %258 = vst [vmem:[#allocation2 + $0x20] sm:$0xff] %v111
    %259 = vst [vmem:[#allocation2 + $0x28] sm:$0xff] %v152
    %260 = vst [vmem:[#allocation2 + $0x30] sm:$0xff] %v193
    %261 = vst [vmem:[#allocation2 + $0x38] sm:$0xff] %v234
    %262 = vst [vmem:[#allocation2 + $0x40] sm:$0xff] %v114
    %263 = vst [vmem:[#allocation2 + $0x48] sm:$0xff] %v155
    %264 = vst [vmem:[#allocation2 + $0x50] sm:$0xff] %v196
    %265 = vst [vmem:[#allocation2 + $0x58] sm:$0xff] %v237
    %266 = vst [vmem:[#allocation2 + $0x60] sm:$0xff] %v117
    %267 = vst [vmem:[#allocation2 + $0x68] sm:$0xff] %v158
    %268 = vst [vmem:[#allocation2 + $0x70] sm:$0xff] %v199
    %269 = vst [vmem:[#allocation2 + $0x78] sm:$0xff] %v240
    %270 = vst [vmem:[#allocation2 + $0x80] sm:$0xff] %v120
    %271 = vst [vmem:[#allocation2 + $0x88] sm:$0xff] %v161
    %272 = vst [vmem:[#allocation2 + $0x90] sm:$0xff] %v202
    %273 = vst [vmem:[#allocation2 + $0x98] sm:$0xff] %v243
    %274 = vst [vmem:[#allocation2 + $0xa0] sm:$0xff] %v123
    %275 = vst [vmem:[#allocation2 + $0xa8] sm:$0xff] %v164
    %276 = vst [vmem:[#allocation2 + $0xb0] sm:$0xff] %v205
    %277 = vst [vmem:[#allocation2 + $0xb8] sm:$0xff] %v246
    %278 = vst [vmem:[#allocation2 + $0xc0] sm:$0xff] %v126
    %279 = vst [vmem:[#allocation2 + $0xc8] sm:$0xff] %v167
    %280 = vst [vmem:[#allocation2 + $0xd0] sm:$0xff] %v208
    %281 = vst [vmem:[#allocation2 + $0xd8] sm:$0xff] %v249
    %282 = vst [vmem:[#allocation2 + $0xe0] sm:$0xff] %v129
    %283 = vst [vmem:[#allocation2 + $0xe8] sm:$0xff] %v170
    %284 = vst [vmem:[#allocation2 + $0xf0] sm:$0xff] %v211
    %285 = vst [vmem:[#allocation2 + $0xf8] sm:$0xff] %v252
    %v286 = vld [vmem:[#allocation2] sm:$0xff]
    %v287 = vld [vmem:[#allocation2 + $0x8] sm:$0xff]
    %v288 = vld [vmem:[#allocation2 + $0x10] sm:$0xff]
    %v289 = vld [vmem:[#allocation2 + $0x18] sm:$0xff]
    %v290 = vld [vmem:[#allocation3] sm:$0xff]
    %v291 = vld [vmem:[#allocation3 + $0x8] sm:$0xff]
    %v292 = vld [vmem:[#allocation3 + $0x10] sm:$0xff]
    %v293 = vld [vmem:[#allocation3 + $0x18] sm:$0xff]
    %v294 = vld [vmem:[#allocation3 + $0x20] sm:$0xff]
    %v295 = vld [vmem:[#allocation3 + $0x28] sm:$0xff]
    %v296 = vld [vmem:[#allocation3 + $0x30] sm:$0xff]
    %v297 = vld [vmem:[#allocation3 + $0x38] sm:$0xff]
    %v298 = vld [vmem:[#allocation3 + $0x40] sm:$0xff]
    %v299 = vld [vmem:[#allocation3 + $0x48] sm:$0xff]
    %v300 = vld [vmem:[#allocation3 + $0x50] sm:$0xff]
    %v301 = vld [vmem:[#allocation3 + $0x58] sm:$0xff]
    %v302 = vld [vmem:[#allocation3 + $0x60] sm:$0xff]
    %v303 = vld [vmem:[#allocation3 + $0x68] sm:$0xff]
    %v304 = vld [vmem:[#allocation3 + $0x70] sm:$0xff]
    %v305 = vld [vmem:[#allocation3 + $0x78] sm:$0xff]
    %v306 = vld [vmem:[#allocation3 + $0x80] sm:$0xff]
    %v307 = vld [vmem:[#allocation3 + $0x88] sm:$0xff]
    %v308 = vld [vmem:[#allocation3 + $0x90] sm:$0xff]
    %v309 = vld [vmem:[#allocation3 + $0x98] sm:$0xff]
    %v310 = vld [vmem:[#allocation3 + $0xa0] sm:$0xff]
    %v311 = vld [vmem:[#allocation3 + $0xa8] sm:$0xff]
    %v312 = vld [vmem:[#allocation3 + $0xb0] sm:$0xff]
    %v313 = vld [vmem:[#allocation3 + $0xb8] sm:$0xff]
    %v314 = vld [vmem:[#allocation3 + $0xc0] sm:$0xff]
    %v315 = vld [vmem:[#allocation3 + $0xc8] sm:$0xff]
    %v316 = vld [vmem:[#allocation3 + $0xd0] sm:$0xff]
    %v317 = vld [vmem:[#allocation3 + $0xd8] sm:$0xff]
    %v318 = vld [vmem:[#allocation3 + $0xe0] sm:$0xff]
    %v319 = vld [vmem:[#allocation3 + $0xe8] sm:$0xff]
    %v320 = vld [vmem:[#allocation3 + $0xf0] sm:$0xff]
    %v321 = vld [vmem:[#allocation3 + $0xf8] sm:$0xff]
    %v322 = vld [vmem:[#allocation3 + $0x100] sm:$0xff]
    %v323 = vld [vmem:[#allocation3 + $0x108] sm:$0xff]
    %v324 = vld [vmem:[#allocation3 + $0x110] sm:$0xff]
    %v325 = vld [vmem:[#allocation3 + $0x118] sm:$0xff]
    %v326 = vld [vmem:[#allocation3 + $0x120] sm:$0xff]
    %v327 = vld [vmem:[#allocation3 + $0x128] sm:$0xff]
    %v328 = vld [vmem:[#allocation3 + $0x130] sm:$0xff]
    %v329 = vld [vmem:[#allocation3 + $0x138] sm:$0xff]
    %v330 = vld [vmem:[#allocation3 + $0x140] sm:$0xff]
    %v331 = vld [vmem:[#allocation3 + $0x148] sm:$0xff]
    %v332 = vld [vmem:[#allocation3 + $0x150] sm:$0xff]
    %v333 = vld [vmem:[#allocation3 + $0x158] sm:$0xff]
    %v334 = vld [vmem:[#allocation3 + $0x160] sm:$0xff]
    %v335 = vld [vmem:[#allocation3 + $0x168] sm:$0xff]
    %v336 = vld [vmem:[#allocation3 + $0x170] sm:$0xff]
    %v337 = vld [vmem:[#allocation3 + $0x178] sm:$0xff]
    %v338 = vld [vmem:[#allocation3 + $0x180] sm:$0xff]
    %v339 = vld [vmem:[#allocation3 + $0x188] sm:$0xff]
    %v340 = vld [vmem:[#allocation3 + $0x190] sm:$0xff]
    %v341 = vld [vmem:[#allocation3 + $0x198] sm:$0xff]
    %v342 = vld [vmem:[#allocation3 + $0x1a0] sm:$0xff]
    %v343 = vld [vmem:[#allocation3 + $0x1a8] sm:$0xff]
    %v344 = vld [vmem:[#allocation3 + $0x1b0] sm:$0xff]
    %v345 = vld [vmem:[#allocation3 + $0x1b8] sm:$0xff]
    %v346 = vld [vmem:[#allocation3 + $0x1c0] sm:$0xff]
    %v347 = vld [vmem:[#allocation3 + $0x1c8] sm:$0xff]
    %v348 = vld [vmem:[#allocation3 + $0x1d0] sm:$0xff]
    %v349 = vld [vmem:[#allocation3 + $0x1d8] sm:$0xff]
    %v350 = vld [vmem:[#allocation3 + $0x1e0] sm:$0xff]
    %v351 = vld [vmem:[#allocation3 + $0x1e8] sm:$0xff]
    %v352 = vld [vmem:[#allocation3 + $0x1f0] sm:$0xff]
    %v353 = vld [vmem:[#allocation3 + $0x1f8] sm:$0xff]
    %354 = vmatpush.msra.mxu0 %v350
    %355 = vmatpush.msra.mxu0 %v346
    %356 = vmatpush.msra.mxu0 %v342
    %357 = vmatpush.msra.mxu0 %v338
    %358 = vmatpush.msra.mxu0 %v334
    %359 = vmatpush.msra.mxu0 %v330
    %360 = vmatpush.msra.mxu0 %v326
    %361 = vmatpush.msra.mxu0 %v322
    %362 = vmatpush.msra.mxu0 %v318
    %363 = vmatpush.msra.mxu0 %v314
    %364 = vmatpush.msra.mxu0 %v310
    %365 = vmatpush.msra.mxu0 %v306
    %366 = vmatpush.msra.mxu0 %v302
    %367 = vmatpush.msra.mxu0 %v298
    %368 = vmatpush.msra.mxu0 %v294
    %369 = vmatpush.msra.mxu0 %v290
    %370 = vmatmul.f32.gmra.mxu0 0.0
    %v371 = vpop.f32.mrf.mxu0
    %v372 = vadd.f32 0.0, %v371
    %373 = vdwg.mxu0
    %374 = vmatpush.msra.mxu0 %v351
    %375 = vmatpush.msra.mxu0 %v347
    %376 = vmatpush.msra.mxu0 %v343
    %377 = vmatpush.msra.mxu0 %v339
    %378 = vmatpush.msra.mxu0 %v335
    %379 = vmatpush.msra.mxu0 %v331
    %380 = vmatpush.msra.mxu0 %v327
    %381 = vmatpush.msra.mxu0 %v323
    %382 = vmatpush.msra.mxu0 %v319
    %383 = vmatpush.msra.mxu0 %v315
    %384 = vmatpush.msra.mxu0 %v311
    %385 = vmatpush.msra.mxu0 %v307
    %386 = vmatpush.msra.mxu0 %v303
    %387 = vmatpush.msra.mxu0 %v299
    %388 = vmatpush.msra.mxu0 %v295
    %389 = vmatpush.msra.mxu0 %v291
    %390 = vmatmul.f32.gmra.mxu0 0.0
    %v391 = vpop.f32.mrf.mxu0
    %v392 = vadd.f32 0.0, %v391
    %393 = vdwg.mxu0
    %394 = vmatpush.msra.mxu0 %v352
    %395 = vmatpush.msra.mxu0 %v348
    %396 = vmatpush.msra.mxu0 %v344
    %397 = vmatpush.msra.mxu0 %v340
    %398 = vmatpush.msra.mxu0 %v336
    %399 = vmatpush.msra.mxu0 %v332
    %400 = vmatpush.msra.mxu0 %v328
    %401 = vmatpush.msra.mxu0 %v324
    %402 = vmatpush.msra.mxu0 %v320
    %403 = vmatpush.msra.mxu0 %v316
    %404 = vmatpush.msra.mxu0 %v312
    %405 = vmatpush.msra.mxu0 %v308
    %406 = vmatpush.msra.mxu0 %v304
    %407 = vmatpush.msra.mxu0 %v300
    %408 = vmatpush.msra.mxu0 %v296
    %409 = vmatpush.msra.mxu0 %v292
    %410 = vmatmul.f32.gmra.mxu0 0.0
    %v411 = vpop.f32.mrf.mxu0
    %v412 = vadd.f32 0.0, %v411
    %413 = vdwg.mxu0
    %414 = vmatpush.msra.mxu0 %v353
    %415 = vmatpush.msra.mxu0 %v349
    %416 = vmatpush.msra.mxu0 %v345
    %417 = vmatpush.msra.mxu0 %v341
    %418 = vmatpush.msra.mxu0 %v337
    %419 = vmatpush.msra.mxu0 %v333
    %420 = vmatpush.msra.mxu0 %v329
    %421 = vmatpush.msra.mxu0 %v325
    %422 = vmatpush.msra.mxu0 %v321
    %423 = vmatpush.msra.mxu0 %v317
    %424 = vmatpush.msra.mxu0 %v313
    %425 = vmatpush.msra.mxu0 %v309
    %426 = vmatpush.msra.mxu0 %v305
    %427 = vmatpush.msra.mxu0 %v301
    %428 = vmatpush.msra.mxu0 %v297
    %429 = vmatpush.msra.mxu0 %v293
    %430 = vmatmul.f32.gmra.mxu0 0.0
    %v431 = vpop.f32.mrf.mxu0
    %v432 = vadd.f32 0.0, %v431
    %433 = vdwg.mxu0
    %v434 = vadd.f32 %v286, %v372
    %v435 = vadd.f32 %v287, %v392
    %v436 = vadd.f32 %v288, %v412
    %v437 = vadd.f32 %v289, %v432
    %v438 = vxor.u32 %v434, 2147483648
    %v439 = vxor.u32 %v435, 2147483648
    %v440 = vxor.u32 %v436, 2147483648
    %v441 = vmul.f32 %v438, 1.442695
    %v442 = vpow.pop %v441
    %v443 = vmul.f32 %v439, 1.442695
    %v444 = vpow.pop %v443
    %v445 = vmul.f32 %v440, 1.442695
    %v446 = vpow.pop %v445
    %v447 = vadd.f32 %v442, 1.0
    %v448 = vadd.f32 %v444, 1.0
    %v449 = vadd.f32 %v446, 1.0
    %v450 = vrcp.pop %v447
    %v451 = vmul.f32 %v447, %v450
    %v452 = vsub.f32 1.0, %v451
    %v453 = vmul.f32 %v450, %v452
    %v454 = vadd.f32 %v450, %v453
    %vm455 = vweird.f32 %v447
    %vm456 = vweird.f32 %v450
    %vm457 = vmor %vm455, %vm456
    %v458 = vsel %vm457, %v450, %v454
    %v459 = vand.u32 2147483647, %v447
    %vm460 = vcmp.eq.f32.partialorder %v459, 8.507059e+37
    %v461 = vand.u32 %v447, 2147483648
    %v462 = vor.u32 1.1754944e-38, %v461
    %v463 = vsel %vm460, %v462, %v458
    %v464 = vmul.f32 1.0, %v463
    %v465 = vrcp.pop %v448
    %v466 = vmul.f32 %v448, %v465
    %v467 = vsub.f32 1.0, %v466
    %v468 = vmul.f32 %v465, %v467
    %v469 = vadd.f32 %v465, %v468
    %vm470 = vweird.f32 %v448
    %vm471 = vweird.f32 %v465
    %vm472 = vmor %vm470, %vm471
    %v473 = vsel %vm472, %v465, %v469
    %v474 = vand.u32 2147483647, %v448
    %vm475 = vcmp.eq.f32.partialorder %v474, 8.507059e+37
    %v476 = vand.u32 %v448, 2147483648
    %v477 = vor.u32 1.1754944e-38, %v476
    %v478 = vsel %vm475, %v477, %v473
    %v479 = vmul.f32 1.0, %v478
    %v480 = vrcp.pop %v449
    %v481 = vmul.f32 %v449, %v480
    %v482 = vsub.f32 1.0, %v481
    %v483 = vmul.f32 %v480, %v482
    %v484 = vadd.f32 %v480, %v483
    %vm485 = vweird.f32 %v449
    %vm486 = vweird.f32 %v480
    %vm487 = vmor %vm485, %vm486
    %v488 = vsel %vm487, %v480, %v484
    %v489 = vand.u32 2147483647, %v449
    %vm490 = vcmp.eq.f32.partialorder %v489, 8.507059e+37
    %v491 = vand.u32 %v449, 2147483648
    %v492 = vor.u32 1.1754944e-38, %v491
    %v493 = vsel %vm490, %v492, %v488
    %v494 = vmul.f32 1.0, %v493
    %v495 = vtanh.pop %v437
    %v496 = vmul.f32 %v479, 0.0
    %v497 = vmul.f32 %v464, %v495
    %v498 = vadd.f32 %v496, %v497
    %v499 = vtanh.pop %v498
    %v500 = vmul.f32 %v494, %v499
    %v501 = vld [vmem:[#allocation2 + $0x20] sm:$0xff]
    %v502 = vld [vmem:[#allocation2 + $0x28] sm:$0xff]
    %v503 = vld [vmem:[#allocation2 + $0x30] sm:$0xff]
    %v504 = vld [vmem:[#allocation2 + $0x38] sm:$0xff]
    %505 = vmatpush.msra.mxu0 %v350
    %506 = vmatpush.msra.mxu0 %v346
    %507 = vmatpush.msra.mxu0 %v342
    %508 = vmatpush.msra.mxu0 %v338
    %509 = vmatpush.msra.mxu0 %v334
    %510 = vmatpush.msra.mxu0 %v330
    %511 = vmatpush.msra.mxu0 %v326
    %512 = vmatpush.msra.mxu0 %v322
    %513 = vmatpush.msra.mxu0 %v318
    %514 = vmatpush.msra.mxu0 %v314
    %515 = vmatpush.msra.mxu0 %v310
    %516 = vmatpush.msra.mxu0 %v306
    %517 = vmatpush.msra.mxu0 %v302
    %518 = vmatpush.msra.mxu0 %v298
    %519 = vmatpush.msra.mxu0 %v294
    %520 = vmatpush.msra.mxu0 %v290
    %521 = vmatmul.f32.gmra.mxu0 %v500
    %v522 = vpop.f32.mrf.mxu0
    %v523 = vadd.f32 0.0, %v522
    %524 = vdwg.mxu0
    %525 = vmatpush.msra.mxu0 %v351
    %526 = vmatpush.msra.mxu0 %v347
    %527 = vmatpush.msra.mxu0 %v343
    %528 = vmatpush.msra.mxu0 %v339
    %529 = vmatpush.msra.mxu0 %v335
    %530 = vmatpush.msra.mxu0 %v331
    %531 = vmatpush.msra.mxu0 %v327
    %532 = vmatpush.msra.mxu0 %v323
    %533 = vmatpush.msra.mxu0 %v319
    %534 = vmatpush.msra.mxu0 %v315
    %535 = vmatpush.msra.mxu0 %v311
    %536 = vmatpush.msra.mxu0 %v307
    %537 = vmatpush.msra.mxu0 %v303
    %538 = vmatpush.msra.mxu0 %v299
    %539 = vmatpush.msra.mxu0 %v295
    %540 = vmatpush.msra.mxu0 %v291
    %541 = vmatmul.f32.gmra.mxu0 %v500
    %v542 = vpop.f32.mrf.mxu0
    %v543 = vadd.f32 0.0, %v542
    %544 = vdwg.mxu0
    %545 = vmatpush.msra.mxu0 %v352
    %546 = vmatpush.msra.mxu0 %v348
    %547 = vmatpush.msra.mxu0 %v344
    %548 = vmatpush.msra.mxu0 %v340
    %549 = vmatpush.msra.mxu0 %v336
    %550 = vmatpush.msra.mxu0 %v332
    %551 = vmatpush.msra.mxu0 %v328
    %552 = vmatpush.msra.mxu0 %v324
    %553 = vmatpush.msra.mxu0 %v320
    %554 = vmatpush.msra.mxu0 %v316
    %555 = vmatpush.msra.mxu0 %v312
    %556 = vmatpush.msra.mxu0 %v308
    %557 = vmatpush.msra.mxu0 %v304
    %558 = vmatpush.msra.mxu0 %v300
    %559 = vmatpush.msra.mxu0 %v296
    %560 = vmatpush.msra.mxu0 %v292
    %561 = vmatmul.f32.gmra.mxu0 %v500
    %v562 = vpop.f32.mrf.mxu0
    %v563 = vadd.f32 0.0, %v562
    %564 = vdwg.mxu0
    %565 = vmatpush.msra.mxu0 %v353
    %566 = vmatpush.msra.mxu0 %v349
    %567 = vmatpush.msra.mxu0 %v345
    %568 = vmatpush.msra.mxu0 %v341
    %569 = vmatpush.msra.mxu0 %v337
    %570 = vmatpush.msra.mxu0 %v333
    %571 = vmatpush.msra.mxu0 %v329
    %572 = vmatpush.msra.mxu0 %v325
    %573 = vmatpush.msra.mxu0 %v321
    %574 = vmatpush.msra.mxu0 %v317
    %575 = vmatpush.msra.mxu0 %v313
    %576 = vmatpush.msra.mxu0 %v309
    %577 = vmatpush.msra.mxu0 %v305
    %578 = vmatpush.msra.mxu0 %v301
    %579 = vmatpush.msra.mxu0 %v297
    %580 = vmatpush.msra.mxu0 %v293
    %581 = vmatmul.f32.gmra.mxu0 %v500
    %v582 = vpop.f32.mrf.mxu0
    %v583 = vadd.f32 0.0, %v582
    %584 = vdwg.mxu0
    %v585 = vadd.f32 %v501, %v523
    %v586 = vadd.f32 %v502, %v543
    %v587 = vadd.f32 %v503, %v563
    %v588 = vadd.f32 %v504, %v583
    %v589 = vxor.u32 %v585, 2147483648
    %v590 = vxor.u32 %v586, 2147483648
    %v591 = vxor.u32 %v587, 2147483648
    %v592 = vmul.f32 %v589, 1.442695
    %v593 = vpow.pop %v592
    %v594 = vmul.f32 %v590, 1.442695
    %v595 = vpow.pop %v594
    %v596 = vmul.f32 %v591, 1.442695
    %v597 = vpow.pop %v596
    %v598 = vadd.f32 %v593, 1.0
    %v599 = vadd.f32 %v595, 1.0
    %v600 = vadd.f32 %v597, 1.0
    %v601 = vrcp.pop %v598
    %v602 = vmul.f32 %v598, %v601
    %v603 = vsub.f32 1.0, %v602
    %v604 = vmul.f32 %v601, %v603
    %v605 = vadd.f32 %v601, %v604
    %vm606 = vweird.f32 %v598
    %vm607 = vweird.f32 %v601
    %vm608 = vmor %vm606, %vm607
    %v609 = vsel %vm608, %v601, %v605
    %v610 = vand.u32 2147483647, %v598
    %vm611 = vcmp.eq.f32.partialorder %v610, 8.507059e+37
    %v612 = vand.u32 %v598, 2147483648
    %v613 = vor.u32 1.1754944e-38, %v612
    %v614 = vsel %vm611, %v613, %v609
    %v615 = vmul.f32 1.0, %v614
    %v616 = vrcp.pop %v599
    %v617 = vmul.f32 %v599, %v616
    %v618 = vsub.f32 1.0, %v617
    %v619 = vmul.f32 %v616, %v618
    %v620 = vadd.f32 %v616, %v619
    %vm621 = vweird.f32 %v599
    %vm622 = vweird.f32 %v616
    %vm623 = vmor %vm621, %vm622
    %v624 = vsel %vm623, %v616, %v620
    %v625 = vand.u32 2147483647, %v599
    %vm626 = vcmp.eq.f32.partialorder %v625, 8.507059e+37
    %v627 = vand.u32 %v599, 2147483648
    %v628 = vor.u32 1.1754944e-38, %v627
    %v629 = vsel %vm626, %v628, %v624
    %v630 = vmul.f32 1.0, %v629
    %v631 = vrcp.pop %v600
    %v632 = vmul.f32 %v600, %v631
    %v633 = vsub.f32 1.0, %v632
    %v634 = vmul.f32 %v631, %v633
    %v635 = vadd.f32 %v631, %v634
    %vm636 = vweird.f32 %v600
    %vm637 = vweird.f32 %v631
    %vm638 = vmor %vm636, %vm637
    %v639 = vsel %vm638, %v631, %v635
    %v640 = vand.u32 2147483647, %v600
    %vm641 = vcmp.eq.f32.partialorder %v640, 8.507059e+37
    %v642 = vand.u32 %v600, 2147483648
    %v643 = vor.u32 1.1754944e-38, %v642
    %v644 = vsel %vm641, %v643, %v639
    %v645 = vmul.f32 1.0, %v644
    %v646 = vtanh.pop %v588
    %v647 = vmul.f32 %v630, %v498
    %v648 = vmul.f32 %v615, %v646
    %v649 = vadd.f32 %v647, %v648
    %v650 = vtanh.pop %v649
    %v651 = vmul.f32 %v645, %v650
    %v652 = vld [vmem:[#allocation2 + $0x40] sm:$0xff]
    %v653 = vld [vmem:[#allocation2 + $0x48] sm:$0xff]
    %v654 = vld [vmem:[#allocation2 + $0x50] sm:$0xff]
    %v655 = vld [vmem:[#allocation2 + $0x58] sm:$0xff]
    %656 = vmatpush.msra.mxu0 %v350
    %657 = vmatpush.msra.mxu0 %v346
    %658 = vmatpush.msra.mxu0 %v342
    %659 = vmatpush.msra.mxu0 %v338
    %660 = vmatpush.msra.mxu0 %v334
    %661 = vmatpush.msra.mxu0 %v330
    %662 = vmatpush.msra.mxu0 %v326
    %663 = vmatpush.msra.mxu0 %v322
    %664 = vmatpush.msra.mxu0 %v318
    %665 = vmatpush.msra.mxu0 %v314
    %666 = vmatpush.msra.mxu0 %v310
    %667 = vmatpush.msra.mxu0 %v306
    %668 = vmatpush.msra.mxu0 %v302
    %669 = vmatpush.msra.mxu0 %v298
    %670 = vmatpush.msra.mxu0 %v294
    %671 = vmatpush.msra.mxu0 %v290
    %672 = vmatmul.f32.gmra.mxu0 %v651
    %v673 = vpop.f32.mrf.mxu0
    %v674 = vadd.f32 0.0, %v673
    %675 = vdwg.mxu0
    %676 = vmatpush.msra.mxu0 %v351
    %677 = vmatpush.msra.mxu0 %v347
    %678 = vmatpush.msra.mxu0 %v343
    %679 = vmatpush.msra.mxu0 %v339
    %680 = vmatpush.msra.mxu0 %v335
    %681 = vmatpush.msra.mxu0 %v331
    %682 = vmatpush.msra.mxu0 %v327
    %683 = vmatpush.msra.mxu0 %v323
    %684 = vmatpush.msra.mxu0 %v319
    %685 = vmatpush.msra.mxu0 %v315
    %686 = vmatpush.msra.mxu0 %v311
    %687 = vmatpush.msra.mxu0 %v307
    %688 = vmatpush.msra.mxu0 %v303
    %689 = vmatpush.msra.mxu0 %v299
    %690 = vmatpush.msra.mxu0 %v295
    %691 = vmatpush.msra.mxu0 %v291
    %692 = vmatmul.f32.gmra.mxu0 %v651
    %v693 = vpop.f32.mrf.mxu0
    %v694 = vadd.f32 0.0, %v693
    %695 = vdwg.mxu0
    %696 = vmatpush.msra.mxu0 %v352
    %697 = vmatpush.msra.mxu0 %v348
    %698 = vmatpush.msra.mxu0 %v344
    %699 = vmatpush.msra.mxu0 %v340
    %700 = vmatpush.msra.mxu0 %v336
    %701 = vmatpush.msra.mxu0 %v332
    %702 = vmatpush.msra.mxu0 %v328
    %703 = vmatpush.msra.mxu0 %v324
    %704 = vmatpush.msra.mxu0 %v320
    %705 = vmatpush.msra.mxu0 %v316
    %706 = vmatpush.msra.mxu0 %v312
    %707 = vmatpush.msra.mxu0 %v308
    %708 = vmatpush.msra.mxu0 %v304
    %709 = vmatpush.msra.mxu0 %v300
    %710 = vmatpush.msra.mxu0 %v296
    %711 = vmatpush.msra.mxu0 %v292
    %712 = vmatmul.f32.gmra.mxu0 %v651
    %v713 = vpop.f32.mrf.mxu0
    %v714 = vadd.f32 0.0, %v713
    %715 = vdwg.mxu0
    %716 = vmatpush.msra.mxu0 %v353
    %717 = vmatpush.msra.mxu0 %v349
    %718 = vmatpush.msra.mxu0 %v345
    %719 = vmatpush.msra.mxu0 %v341
    %720 = vmatpush.msra.mxu0 %v337
    %721 = vmatpush.msra.mxu0 %v333
    %722 = vmatpush.msra.mxu0 %v329
    %723 = vmatpush.msra.mxu0 %v325
    %724 = vmatpush.msra.mxu0 %v321
    %725 = vmatpush.msra.mxu0 %v317
    %726 = vmatpush.msra.mxu0 %v313
    %727 = vmatpush.msra.mxu0 %v309
    %728 = vmatpush.msra.mxu0 %v305
    %729 = vmatpush.msra.mxu0 %v301
    %730 = vmatpush.msra.mxu0 %v297
    %731 = vmatpush.msra.mxu0 %v293
    %732 = vmatmul.f32.gmra.mxu0 %v651
    %v733 = vpop.f32.mrf.mxu0
    %v734 = vadd.f32 0.0, %v733
    %735 = vdwg.mxu0
    %v736 = vadd.f32 %v652, %v674
    %v737 = vadd.f32 %v653, %v694
    %v738 = vadd.f32 %v654, %v714
    %v739 = vadd.f32 %v655, %v734
    %v740 = vxor.u32 %v736, 2147483648
    %v741 = vxor.u32 %v737, 2147483648
    %v742 = vxor.u32 %v738, 2147483648
    %v743 = vmul.f32 %v740, 1.442695
    %v744 = vpow.pop %v743
    %v745 = vmul.f32 %v741, 1.442695
    %v746 = vpow.pop %v745
    %v747 = vmul.f32 %v742, 1.442695
    %v748 = vpow.pop %v747
    %v749 = vadd.f32 %v744, 1.0
    %v750 = vadd.f32 %v746, 1.0
    %v751 = vadd.f32 %v748, 1.0
    %v752 = vrcp.pop %v749
    %v753 = vmul.f32 %v749, %v752
    %v754 = vsub.f32 1.0, %v753
    %v755 = vmul.f32 %v752, %v754
    %v756 = vadd.f32 %v752, %v755
    %vm757 = vweird.f32 %v749
    %vm758 = vweird.f32 %v752
    %vm759 = vmor %vm757, %vm758
    %v760 = vsel %vm759, %v752, %v756
    %v761 = vand.u32 2147483647, %v749
    %vm762 = vcmp.eq.f32.partialorder %v761, 8.507059e+37
    %v763 = vand.u32 %v749, 2147483648
    %v764 = vor.u32 1.1754944e-38, %v763
    %v765 = vsel %vm762, %v764, %v760
    %v766 = vmul.f32 1.0, %v765
    %v767 = vrcp.pop %v750
    %v768 = vmul.f32 %v750, %v767
    %v769 = vsub.f32 1.0, %v768
    %v770 = vmul.f32 %v767, %v769
    %v771 = vadd.f32 %v767, %v770
    %vm772 = vweird.f32 %v750
    %vm773 = vweird.f32 %v767
    %vm774 = vmor %vm772, %vm773
    %v775 = vsel %vm774, %v767, %v771
    %v776 = vand.u32 2147483647, %v750
    %vm777 = vcmp.eq.f32.partialorder %v776, 8.507059e+37
    %v778 = vand.u32 %v750, 2147483648
    %v779 = vor.u32 1.1754944e-38, %v778
    %v780 = vsel %vm777, %v779, %v775
    %v781 = vmul.f32 1.0, %v780
    %v782 = vrcp.pop %v751
    %v783 = vmul.f32 %v751, %v782
    %v784 = vsub.f32 1.0, %v783
    %v785 = vmul.f32 %v782, %v784
    %v786 = vadd.f32 %v782, %v785
    %vm787 = vweird.f32 %v751
    %vm788 = vweird.f32 %v782
    %vm789 = vmor %vm787, %vm788
    %v790 = vsel %vm789, %v782, %v786
    %v791 = vand.u32 2147483647, %v751
    %vm792 = vcmp.eq.f32.partialorder %v791, 8.507059e+37
    %v793 = vand.u32 %v751, 2147483648
    %v794 = vor.u32 1.1754944e-38, %v793
    %v795 = vsel %vm792, %v794, %v790
    %v796 = vmul.f32 1.0, %v795
    %v797 = vtanh.pop %v739
    %v798 = vmul.f32 %v781, %v649
    %v799 = vmul.f32 %v766, %v797
    %v800 = vadd.f32 %v798, %v799
    %v801 = vtanh.pop %v800
    %v802 = vmul.f32 %v796, %v801
    %v803 = vld [vmem:[#allocation2 + $0x60] sm:$0xff]
    %v804 = vld [vmem:[#allocation2 + $0x68] sm:$0xff]
    %v805 = vld [vmem:[#allocation2 + $0x70] sm:$0xff]
    %v806 = vld [vmem:[#allocation2 + $0x78] sm:$0xff]
    %807 = vmatpush.msra.mxu0 %v350
    %808 = vmatpush.msra.mxu0 %v346
    %809 = vmatpush.msra.mxu0 %v342
    %810 = vmatpush.msra.mxu0 %v338
    %811 = vmatpush.msra.mxu0 %v334
    %812 = vmatpush.msra.mxu0 %v330
    %813 = vmatpush.msra.mxu0 %v326
    %814 = vmatpush.msra.mxu0 %v322
    %815 = vmatpush.msra.mxu0 %v318
    %816 = vmatpush.msra.mxu0 %v314
    %817 = vmatpush.msra.mxu0 %v310
    %818 = vmatpush.msra.mxu0 %v306
    %819 = vmatpush.msra.mxu0 %v302
    %820 = vmatpush.msra.mxu0 %v298
    %821 = vmatpush.msra.mxu0 %v294
    %822 = vmatpush.msra.mxu0 %v290
    %823 = vmatmul.f32.gmra.mxu0 %v802
    %v824 = vpop.f32.mrf.mxu0
    %v825 = vadd.f32 0.0, %v824
    %826 = vdwg.mxu0
    %827 = vmatpush.msra.mxu0 %v351
    %828 = vmatpush.msra.mxu0 %v347
    %829 = vmatpush.msra.mxu0 %v343
    %830 = vmatpush.msra.mxu0 %v339
    %831 = vmatpush.msra.mxu0 %v335
    %832 = vmatpush.msra.mxu0 %v331
    %833 = vmatpush.msra.mxu0 %v327
    %834 = vmatpush.msra.mxu0 %v323
    %835 = vmatpush.msra.mxu0 %v319
    %836 = vmatpush.msra.mxu0 %v315
    %837 = vmatpush.msra.mxu0 %v311
    %838 = vmatpush.msra.mxu0 %v307
    %839 = vmatpush.msra.mxu0 %v303
    %840 = vmatpush.msra.mxu0 %v299
    %841 = vmatpush.msra.mxu0 %v295
    %842 = vmatpush.msra.mxu0 %v291
    %843 = vmatmul.f32.gmra.mxu0 %v802
    %v844 = vpop.f32.mrf.mxu0
    %v845 = vadd.f32 0.0, %v844
    %846 = vdwg.mxu0
    %847 = vmatpush.msra.mxu0 %v352
    %848 = vmatpush.msra.mxu0 %v348
    %849 = vmatpush.msra.mxu0 %v344
    %850 = vmatpush.msra.mxu0 %v340
    %851 = vmatpush.msra.mxu0 %v336
    %852 = vmatpush.msra.mxu0 %v332
    %853 = vmatpush.msra.mxu0 %v328
    %854 = vmatpush.msra.mxu0 %v324
    %855 = vmatpush.msra.mxu0 %v320
    %856 = vmatpush.msra.mxu0 %v316
    %857 = vmatpush.msra.mxu0 %v312
    %858 = vmatpush.msra.mxu0 %v308
    %859 = vmatpush.msra.mxu0 %v304
    %860 = vmatpush.msra.mxu0 %v300
    %861 = vmatpush.msra.mxu0 %v296
    %862 = vmatpush.msra.mxu0 %v292
    %863 = vmatmul.f32.gmra.mxu0 %v802
    %v864 = vpop.f32.mrf.mxu0
    %v865 = vadd.f32 0.0, %v864
    %866 = vdwg.mxu0
    %867 = vmatpush.msra.mxu0 %v353
    %868 = vmatpush.msra.mxu0 %v349
    %869 = vmatpush.msra.mxu0 %v345
    %870 = vmatpush.msra.mxu0 %v341
    %871 = vmatpush.msra.mxu0 %v337
    %872 = vmatpush.msra.mxu0 %v333
    %873 = vmatpush.msra.mxu0 %v329
    %874 = vmatpush.msra.mxu0 %v325
    %875 = vmatpush.msra.mxu0 %v321
    %876 = vmatpush.msra.mxu0 %v317
    %877 = vmatpush.msra.mxu0 %v313
    %878 = vmatpush.msra.mxu0 %v309
    %879 = vmatpush.msra.mxu0 %v305
    %880 = vmatpush.msra.mxu0 %v301
    %881 = vmatpush.msra.mxu0 %v297
    %882 = vmatpush.msra.mxu0 %v293
    %883 = vmatmul.f32.gmra.mxu0 %v802
    %v884 = vpop.f32.mrf.mxu0
    %v885 = vadd.f32 0.0, %v884
    %886 = vdwg.mxu0
    %v887 = vadd.f32 %v803, %v825
    %v888 = vadd.f32 %v804, %v845
    %v889 = vadd.f32 %v805, %v865
    %v890 = vadd.f32 %v806, %v885
    %v891 = vxor.u32 %v887, 2147483648
    %v892 = vxor.u32 %v888, 2147483648
    %v893 = vxor.u32 %v889, 2147483648
    %v894 = vmul.f32 %v891, 1.442695
    %v895 = vpow.pop %v894
    %v896 = vmul.f32 %v892, 1.442695
    %v897 = vpow.pop %v896
    %v898 = vmul.f32 %v893, 1.442695
    %v899 = vpow.pop %v898
    %v900 = vadd.f32 %v895, 1.0
    %v901 = vadd.f32 %v897, 1.0
    %v902 = vadd.f32 %v899, 1.0
    %v903 = vrcp.pop %v900
    %v904 = vmul.f32 %v900, %v903
    %v905 = vsub.f32 1.0, %v904
    %v906 = vmul.f32 %v903, %v905
    %v907 = vadd.f32 %v903, %v906
    %vm908 = vweird.f32 %v900
    %vm909 = vweird.f32 %v903
    %vm910 = vmor %vm908, %vm909
    %v911 = vsel %vm910, %v903, %v907
    %v912 = vand.u32 2147483647, %v900
    %vm913 = vcmp.eq.f32.partialorder %v912, 8.507059e+37
    %v914 = vand.u32 %v900, 2147483648
    %v915 = vor.u32 1.1754944e-38, %v914
    %v916 = vsel %vm913, %v915, %v911
    %v917 = vmul.f32 1.0, %v916
    %v918 = vrcp.pop %v901
    %v919 = vmul.f32 %v901, %v918
    %v920 = vsub.f32 1.0, %v919
    %v921 = vmul.f32 %v918, %v920
    %v922 = vadd.f32 %v918, %v921
    %vm923 = vweird.f32 %v901
    %vm924 = vweird.f32 %v918
    %vm925 = vmor %vm923, %vm924
    %v926 = vsel %vm925, %v918, %v922
    %v927 = vand.u32 2147483647, %v901
    %vm928 = vcmp.eq.f32.partialorder %v927, 8.507059e+37
    %v929 = vand.u32 %v901, 2147483648
    %v930 = vor.u32 1.1754944e-38, %v929
    %v931 = vsel %vm928, %v930, %v926
    %v932 = vmul.f32 1.0, %v931
    %v933 = vrcp.pop %v902
    %v934 = vmul.f32 %v902, %v933
    %v935 = vsub.f32 1.0, %v934
    %v936 = vmul.f32 %v933, %v935
    %v937 = vadd.f32 %v933, %v936
    %vm938 = vweird.f32 %v902
    %vm939 = vweird.f32 %v933
    %vm940 = vmor %vm938, %vm939
    %v941 = vsel %vm940, %v933, %v937
    %v942 = vand.u32 2147483647, %v902
    %vm943 = vcmp.eq.f32.partialorder %v942, 8.507059e+37
    %v944 = vand.u32 %v902, 2147483648
    %v945 = vor.u32 1.1754944e-38, %v944
    %v946 = vsel %vm943, %v945, %v941
    %v947 = vmul.f32 1.0, %v946
    %v948 = vtanh.pop %v890
    %v949 = vmul.f32 %v932, %v800
    %v950 = vmul.f32 %v917, %v948
    %v951 = vadd.f32 %v949, %v950
    %v952 = vtanh.pop %v951
    %v953 = vmul.f32 %v947, %v952
    %v954 = vld [vmem:[#allocation2 + $0x80] sm:$0xff]
    %v955 = vld [vmem:[#allocation2 + $0x88] sm:$0xff]
    %v956 = vld [vmem:[#allocation2 + $0x90] sm:$0xff]
    %v957 = vld [vmem:[#allocation2 + $0x98] sm:$0xff]
    %958 = vmatpush.msra.mxu0 %v350
    %959 = vmatpush.msra.mxu0 %v346
    %960 = vmatpush.msra.mxu0 %v342
    %961 = vmatpush.msra.mxu0 %v338
    %962 = vmatpush.msra.mxu0 %v334
    %963 = vmatpush.msra.mxu0 %v330
    %964 = vmatpush.msra.mxu0 %v326
    %965 = vmatpush.msra.mxu0 %v322
    %966 = vmatpush.msra.mxu0 %v318
    %967 = vmatpush.msra.mxu0 %v314
    %968 = vmatpush.msra.mxu0 %v310
    %969 = vmatpush.msra.mxu0 %v306
    %970 = vmatpush.msra.mxu0 %v302
    %971 = vmatpush.msra.mxu0 %v298
    %972 = vmatpush.msra.mxu0 %v294
    %973 = vmatpush.msra.mxu0 %v290
    %974 = vmatmul.f32.gmra.mxu0 %v953
    %v975 = vpop.f32.mrf.mxu0
    %v976 = vadd.f32 0.0, %v975
    %977 = vdwg.mxu0
    %978 = vmatpush.msra.mxu0 %v351
    %979 = vmatpush.msra.mxu0 %v347
    %980 = vmatpush.msra.mxu0 %v343
    %981 = vmatpush.msra.mxu0 %v339
    %982 = vmatpush.msra.mxu0 %v335
    %983 = vmatpush.msra.mxu0 %v331
    %984 = vmatpush.msra.mxu0 %v327
    %985 = vmatpush.msra.mxu0 %v323
    %986 = vmatpush.msra.mxu0 %v319
    %987 = vmatpush.msra.mxu0 %v315
    %988 = vmatpush.msra.mxu0 %v311
    %989 = vmatpush.msra.mxu0 %v307
    %990 = vmatpush.msra.mxu0 %v303
    %991 = vmatpush.msra.mxu0 %v299
    %992 = vmatpush.msra.mxu0 %v295
    %993 = vmatpush.msra.mxu0 %v291
    %994 = vmatmul.f32.gmra.mxu0 %v953
    %v995 = vpop.f32.mrf.mxu0
    %v996 = vadd.f32 0.0, %v995
    %997 = vdwg.mxu0
    %998 = vmatpush.msra.mxu0 %v352
    %999 = vmatpush.msra.mxu0 %v348
    %1000 = vmatpush.msra.mxu0 %v344
    %1001 = vmatpush.msra.mxu0 %v340
    %1002 = vmatpush.msra.mxu0 %v336
    %1003 = vmatpush.msra.mxu0 %v332
    %1004 = vmatpush.msra.mxu0 %v328
    %1005 = vmatpush.msra.mxu0 %v324
    %1006 = vmatpush.msra.mxu0 %v320
    %1007 = vmatpush.msra.mxu0 %v316
    %1008 = vmatpush.msra.mxu0 %v312
    %1009 = vmatpush.msra.mxu0 %v308
    %1010 = vmatpush.msra.mxu0 %v304
    %1011 = vmatpush.msra.mxu0 %v300
    %1012 = vmatpush.msra.mxu0 %v296
    %1013 = vmatpush.msra.mxu0 %v292
    %1014 = vmatmul.f32.gmra.mxu0 %v953
    %v1015 = vpop.f32.mrf.mxu0
    %v1016 = vadd.f32 0.0, %v1015
    %1017 = vdwg.mxu0
    %1018 = vmatpush.msra.mxu0 %v353
    %1019 = vmatpush.msra.mxu0 %v349
    %1020 = vmatpush.msra.mxu0 %v345
    %1021 = vmatpush.msra.mxu0 %v341
    %1022 = vmatpush.msra.mxu0 %v337
    %1023 = vmatpush.msra.mxu0 %v333
    %1024 = vmatpush.msra.mxu0 %v329
    %1025 = vmatpush.msra.mxu0 %v325
    %1026 = vmatpush.msra.mxu0 %v321
    %1027 = vmatpush.msra.mxu0 %v317
    %1028 = vmatpush.msra.mxu0 %v313
    %1029 = vmatpush.msra.mxu0 %v309
    %1030 = vmatpush.msra.mxu0 %v305
    %1031 = vmatpush.msra.mxu0 %v301
    %1032 = vmatpush.msra.mxu0 %v297
    %1033 = vmatpush.msra.mxu0 %v293
    %1034 = vmatmul.f32.gmra.mxu0 %v953
    %v1035 = vpop.f32.mrf.mxu0
    %v1036 = vadd.f32 0.0, %v1035
    %1037 = vdwg.mxu0
    %v1038 = vadd.f32 %v954, %v976
    %v1039 = vadd.f32 %v955, %v996
    %v1040 = vadd.f32 %v956, %v1016
    %v1041 = vadd.f32 %v957, %v1036
    %v1042 = vxor.u32 %v1038, 2147483648
    %v1043 = vxor.u32 %v1039, 2147483648
    %v1044 = vxor.u32 %v1040, 2147483648
    %v1045 = vmul.f32 %v1042, 1.442695
    %v1046 = vpow.pop %v1045
    %v1047 = vmul.f32 %v1043, 1.442695
    %v1048 = vpow.pop %v1047
    %v1049 = vmul.f32 %v1044, 1.442695
    %v1050 = vpow.pop %v1049
    %v1051 = vadd.f32 %v1046, 1.0
    %v1052 = vadd.f32 %v1048, 1.0
    %v1053 = vadd.f32 %v1050, 1.0
    %v1054 = vrcp.pop %v1051
    %v1055 = vmul.f32 %v1051, %v1054
    %v1056 = vsub.f32 1.0, %v1055
    %v1057 = vmul.f32 %v1054, %v1056
    %v1058 = vadd.f32 %v1054, %v1057
    %vm1059 = vweird.f32 %v1051
    %vm1060 = vweird.f32 %v1054
    %vm1061 = vmor %vm1059, %vm1060
    %v1062 = vsel %vm1061, %v1054, %v1058
    %v1063 = vand.u32 2147483647, %v1051
    %vm1064 = vcmp.eq.f32.partialorder %v1063, 8.507059e+37
    %v1065 = vand.u32 %v1051, 2147483648
    %v1066 = vor.u32 1.1754944e-38, %v1065
    %v1067 = vsel %vm1064, %v1066, %v1062
    %v1068 = vmul.f32 1.0, %v1067
    %v1069 = vrcp.pop %v1052
    %v1070 = vmul.f32 %v1052, %v1069
    %v1071 = vsub.f32 1.0, %v1070
    %v1072 = vmul.f32 %v1069, %v1071
    %v1073 = vadd.f32 %v1069, %v1072
    %vm1074 = vweird.f32 %v1052
    %vm1075 = vweird.f32 %v1069
    %vm1076 = vmor %vm1074, %vm1075
    %v1077 = vsel %vm1076, %v1069, %v1073
    %v1078 = vand.u32 2147483647, %v1052
    %vm1079 = vcmp.eq.f32.partialorder %v1078, 8.507059e+37
    %v1080 = vand.u32 %v1052, 2147483648
    %v1081 = vor.u32 1.1754944e-38, %v1080
    %v1082 = vsel %vm1079, %v1081, %v1077
    %v1083 = vmul.f32 1.0, %v1082
    %v1084 = vrcp.pop %v1053
    %v1085 = vmul.f32 %v1053, %v1084
    %v1086 = vsub.f32 1.0, %v1085
    %v1087 = vmul.f32 %v1084, %v1086
    %v1088 = vadd.f32 %v1084, %v1087
    %vm1089 = vweird.f32 %v1053
    %vm1090 = vweird.f32 %v1084
    %vm1091 = vmor %vm1089, %vm1090
    %v1092 = vsel %vm1091, %v1084, %v1088
    %v1093 = vand.u32 2147483647, %v1053
    %vm1094 = vcmp.eq.f32.partialorder %v1093, 8.507059e+37
    %v1095 = vand.u32 %v1053, 2147483648
    %v1096 = vor.u32 1.1754944e-38, %v1095
    %v1097 = vsel %vm1094, %v1096, %v1092
    %v1098 = vmul.f32 1.0, %v1097
    %v1099 = vtanh.pop %v1041
    %v1100 = vmul.f32 %v1083, %v951
    %v1101 = vmul.f32 %v1068, %v1099
    %v1102 = vadd.f32 %v1100, %v1101
    %v1103 = vtanh.pop %v1102
    %v1104 = vmul.f32 %v1098, %v1103
    %v1105 = vld [vmem:[#allocation2 + $0xa0] sm:$0xff]
    %v1106 = vld [vmem:[#allocation2 + $0xa8] sm:$0xff]
    %v1107 = vld [vmem:[#allocation2 + $0xb0] sm:$0xff]
    %v1108 = vld [vmem:[#allocation2 + $0xb8] sm:$0xff]
    %1109 = vmatpush.msra.mxu0 %v350
    %1110 = vmatpush.msra.mxu0 %v346
    %1111 = vmatpush.msra.mxu0 %v342
    %1112 = vmatpush.msra.mxu0 %v338
    %1113 = vmatpush.msra.mxu0 %v334
    %1114 = vmatpush.msra.mxu0 %v330
    %1115 = vmatpush.msra.mxu0 %v326
    %1116 = vmatpush.msra.mxu0 %v322
    %1117 = vmatpush.msra.mxu0 %v318
    %1118 = vmatpush.msra.mxu0 %v314
    %1119 = vmatpush.msra.mxu0 %v310
    %1120 = vmatpush.msra.mxu0 %v306
    %1121 = vmatpush.msra.mxu0 %v302
    %1122 = vmatpush.msra.mxu0 %v298
    %1123 = vmatpush.msra.mxu0 %v294
    %1124 = vmatpush.msra.mxu0 %v290
    %1125 = vmatmul.f32.gmra.mxu0 %v1104
    %v1126 = vpop.f32.mrf.mxu0
    %v1127 = vadd.f32 0.0, %v1126
    %1128 = vdwg.mxu0
    %1129 = vmatpush.msra.mxu0 %v351
    %1130 = vmatpush.msra.mxu0 %v347
    %1131 = vmatpush.msra.mxu0 %v343
    %1132 = vmatpush.msra.mxu0 %v339
    %1133 = vmatpush.msra.mxu0 %v335
    %1134 = vmatpush.msra.mxu0 %v331
    %1135 = vmatpush.msra.mxu0 %v327
    %1136 = vmatpush.msra.mxu0 %v323
    %1137 = vmatpush.msra.mxu0 %v319
    %1138 = vmatpush.msra.mxu0 %v315
    %1139 = vmatpush.msra.mxu0 %v311
    %1140 = vmatpush.msra.mxu0 %v307
    %1141 = vmatpush.msra.mxu0 %v303
    %1142 = vmatpush.msra.mxu0 %v299
    %1143 = vmatpush.msra.mxu0 %v295
    %1144 = vmatpush.msra.mxu0 %v291
    %1145 = vmatmul.f32.gmra.mxu0 %v1104
    %v1146 = vpop.f32.mrf.mxu0
    %v1147 = vadd.f32 0.0, %v1146
    %1148 = vdwg.mxu0
    %1149 = vmatpush.msra.mxu0 %v352
    %1150 = vmatpush.msra.mxu0 %v348
    %1151 = vmatpush.msra.mxu0 %v344
    %1152 = vmatpush.msra.mxu0 %v340
    %1153 = vmatpush.msra.mxu0 %v336
    %1154 = vmatpush.msra.mxu0 %v332
    %1155 = vmatpush.msra.mxu0 %v328
    %1156 = vmatpush.msra.mxu0 %v324
    %1157 = vmatpush.msra.mxu0 %v320
    %1158 = vmatpush.msra.mxu0 %v316
    %1159 = vmatpush.msra.mxu0 %v312
    %1160 = vmatpush.msra.mxu0 %v308
    %1161 = vmatpush.msra.mxu0 %v304
    %1162 = vmatpush.msra.mxu0 %v300
    %1163 = vmatpush.msra.mxu0 %v296
    %1164 = vmatpush.msra.mxu0 %v292
    %1165 = vmatmul.f32.gmra.mxu0 %v1104
    %v1166 = vpop.f32.mrf.mxu0
    %v1167 = vadd.f32 0.0, %v1166
    %1168 = vdwg.mxu0
    %1169 = vmatpush.msra.mxu0 %v353
    %1170 = vmatpush.msra.mxu0 %v349
    %1171 = vmatpush.msra.mxu0 %v345
    %1172 = vmatpush.msra.mxu0 %v341
    %1173 = vmatpush.msra.mxu0 %v337
    %1174 = vmatpush.msra.mxu0 %v333
    %1175 = vmatpush.msra.mxu0 %v329
    %1176 = vmatpush.msra.mxu0 %v325
    %1177 = vmatpush.msra.mxu0 %v321
    %1178 = vmatpush.msra.mxu0 %v317
    %1179 = vmatpush.msra.mxu0 %v313
    %1180 = vmatpush.msra.mxu0 %v309
    %1181 = vmatpush.msra.mxu0 %v305
    %1182 = vmatpush.msra.mxu0 %v301
    %1183 = vmatpush.msra.mxu0 %v297
    %1184 = vmatpush.msra.mxu0 %v293
    %1185 = vmatmul.f32.gmra.mxu0 %v1104
    %v1186 = vpop.f32.mrf.mxu0
    %v1187 = vadd.f32 0.0, %v1186
    %1188 = vdwg.mxu0
    %v1189 = vadd.f32 %v1105, %v1127
    %v1190 = vadd.f32 %v1106, %v1147
    %v1191 = vadd.f32 %v1107, %v1167
    %v1192 = vadd.f32 %v1108, %v1187
    %v1193 = vxor.u32 %v1189, 2147483648
    %v1194 = vxor.u32 %v1190, 2147483648
    %v1195 = vxor.u32 %v1191, 2147483648
    %v1196 = vmul.f32 %v1193, 1.442695
    %v1197 = vpow.pop %v1196
    %v1198 = vmul.f32 %v1194, 1.442695
    %v1199 = vpow.pop %v1198
    %v1200 = vmul.f32 %v1195, 1.442695
    %v1201 = vpow.pop %v1200
    %v1202 = vadd.f32 %v1197, 1.0
    %v1203 = vadd.f32 %v1199, 1.0
    %v1204 = vadd.f32 %v1201, 1.0
    %v1205 = vrcp.pop %v1202
    %v1206 = vmul.f32 %v1202, %v1205
    %v1207 = vsub.f32 1.0, %v1206
    %v1208 = vmul.f32 %v1205, %v1207
    %v1209 = vadd.f32 %v1205, %v1208
    %vm1210 = vweird.f32 %v1202
    %vm1211 = vweird.f32 %v1205
    %vm1212 = vmor %vm1210, %vm1211
    %v1213 = vsel %vm1212, %v1205, %v1209
    %v1214 = vand.u32 2147483647, %v1202
    %vm1215 = vcmp.eq.f32.partialorder %v1214, 8.507059e+37
    %v1216 = vand.u32 %v1202, 2147483648
    %v1217 = vor.u32 1.1754944e-38, %v1216
    %v1218 = vsel %vm1215, %v1217, %v1213
    %v1219 = vmul.f32 1.0, %v1218
    %v1220 = vrcp.pop %v1203
    %v1221 = vmul.f32 %v1203, %v1220
    %v1222 = vsub.f32 1.0, %v1221
    %v1223 = vmul.f32 %v1220, %v1222
    %v1224 = vadd.f32 %v1220, %v1223
    %vm1225 = vweird.f32 %v1203
    %vm1226 = vweird.f32 %v1220
    %vm1227 = vmor %vm1225, %vm1226
    %v1228 = vsel %vm1227, %v1220, %v1224
    %v1229 = vand.u32 2147483647, %v1203
    %vm1230 = vcmp.eq.f32.partialorder %v1229, 8.507059e+37
    %v1231 = vand.u32 %v1203, 2147483648
    %v1232 = vor.u32 1.1754944e-38, %v1231
    %v1233 = vsel %vm1230, %v1232, %v1228
    %v1234 = vmul.f32 1.0, %v1233
    %v1235 = vrcp.pop %v1204
    %v1236 = vmul.f32 %v1204, %v1235
    %v1237 = vsub.f32 1.0, %v1236
    %v1238 = vmul.f32 %v1235, %v1237
    %v1239 = vadd.f32 %v1235, %v1238
    %vm1240 = vweird.f32 %v1204
    %vm1241 = vweird.f32 %v1235
    %vm1242 = vmor %vm1240, %vm1241
    %v1243 = vsel %vm1242, %v1235, %v1239
    %v1244 = vand.u32 2147483647, %v1204
    %vm1245 = vcmp.eq.f32.partialorder %v1244, 8.507059e+37
    %v1246 = vand.u32 %v1204, 2147483648
    %v1247 = vor.u32 1.1754944e-38, %v1246
    %v1248 = vsel %vm1245, %v1247, %v1243
    %v1249 = vmul.f32 1.0, %v1248
    %v1250 = vtanh.pop %v1192
    %v1251 = vmul.f32 %v1234, %v1102
    %v1252 = vmul.f32 %v1219, %v1250
    %v1253 = vadd.f32 %v1251, %v1252
    %v1254 = vtanh.pop %v1253
    %v1255 = vmul.f32 %v1249, %v1254
    %v1256 = vld [vmem:[#allocation2 + $0xc0] sm:$0xff]
    %v1257 = vld [vmem:[#allocation2 + $0xc8] sm:$0xff]
    %v1258 = vld [vmem:[#allocation2 + $0xd0] sm:$0xff]
    %v1259 = vld [vmem:[#allocation2 + $0xd8] sm:$0xff]
    %1260 = vmatpush.msra.mxu0 %v350
    %1261 = vmatpush.msra.mxu0 %v346
    %1262 = vmatpush.msra.mxu0 %v342
    %1263 = vmatpush.msra.mxu0 %v338
    %1264 = vmatpush.msra.mxu0 %v334
    %1265 = vmatpush.msra.mxu0 %v330
    %1266 = vmatpush.msra.mxu0 %v326
    %1267 = vmatpush.msra.mxu0 %v322
    %1268 = vmatpush.msra.mxu0 %v318
    %1269 = vmatpush.msra.mxu0 %v314
    %1270 = vmatpush.msra.mxu0 %v310
    %1271 = vmatpush.msra.mxu0 %v306
    %1272 = vmatpush.msra.mxu0 %v302
    %1273 = vmatpush.msra.mxu0 %v298
    %1274 = vmatpush.msra.mxu0 %v294
    %1275 = vmatpush.msra.mxu0 %v290
    %1276 = vmatmul.f32.gmra.mxu0 %v1255
    %v1277 = vpop.f32.mrf.mxu0
    %v1278 = vadd.f32 0.0, %v1277
    %1279 = vdwg.mxu0
    %1280 = vmatpush.msra.mxu0 %v351
    %1281 = vmatpush.msra.mxu0 %v347
    %1282 = vmatpush.msra.mxu0 %v343
    %1283 = vmatpush.msra.mxu0 %v339
    %1284 = vmatpush.msra.mxu0 %v335
    %1285 = vmatpush.msra.mxu0 %v331
    %1286 = vmatpush.msra.mxu0 %v327
    %1287 = vmatpush.msra.mxu0 %v323
    %1288 = vmatpush.msra.mxu0 %v319
    %1289 = vmatpush.msra.mxu0 %v315
    %1290 = vmatpush.msra.mxu0 %v311
    %1291 = vmatpush.msra.mxu0 %v307
    %1292 = vmatpush.msra.mxu0 %v303
    %1293 = vmatpush.msra.mxu0 %v299
    %1294 = vmatpush.msra.mxu0 %v295
    %1295 = vmatpush.msra.mxu0 %v291
    %1296 = vmatmul.f32.gmra.mxu0 %v1255
    %v1297 = vpop.f32.mrf.mxu0
    %v1298 = vadd.f32 0.0, %v1297
    %1299 = vdwg.mxu0
    %1300 = vmatpush.msra.mxu0 %v352
    %1301 = vmatpush.msra.mxu0 %v348
    %1302 = vmatpush.msra.mxu0 %v344
    %1303 = vmatpush.msra.mxu0 %v340
    %1304 = vmatpush.msra.mxu0 %v336
    %1305 = vmatpush.msra.mxu0 %v332
    %1306 = vmatpush.msra.mxu0 %v328
    %1307 = vmatpush.msra.mxu0 %v324
    %1308 = vmatpush.msra.mxu0 %v320
    %1309 = vmatpush.msra.mxu0 %v316
    %1310 = vmatpush.msra.mxu0 %v312
    %1311 = vmatpush.msra.mxu0 %v308
    %1312 = vmatpush.msra.mxu0 %v304
    %1313 = vmatpush.msra.mxu0 %v300
    %1314 = vmatpush.msra.mxu0 %v296
    %1315 = vmatpush.msra.mxu0 %v292
    %1316 = vmatmul.f32.gmra.mxu0 %v1255
    %v1317 = vpop.f32.mrf.mxu0
    %v1318 = vadd.f32 0.0, %v1317
    %1319 = vdwg.mxu0
    %1320 = vmatpush.msra.mxu0 %v353
    %1321 = vmatpush.msra.mxu0 %v349
    %1322 = vmatpush.msra.mxu0 %v345
    %1323 = vmatpush.msra.mxu0 %v341
    %1324 = vmatpush.msra.mxu0 %v337
    %1325 = vmatpush.msra.mxu0 %v333
    %1326 = vmatpush.msra.mxu0 %v329
    %1327 = vmatpush.msra.mxu0 %v325
    %1328 = vmatpush.msra.mxu0 %v321
    %1329 = vmatpush.msra.mxu0 %v317
    %1330 = vmatpush.msra.mxu0 %v313
    %1331 = vmatpush.msra.mxu0 %v309
    %1332 = vmatpush.msra.mxu0 %v305
    %1333 = vmatpush.msra.mxu0 %v301
    %1334 = vmatpush.msra.mxu0 %v297
    %1335 = vmatpush.msra.mxu0 %v293
    %1336 = vmatmul.f32.gmra.mxu0 %v1255
    %v1337 = vpop.f32.mrf.mxu0
    %v1338 = vadd.f32 0.0, %v1337
    %1339 = vdwg.mxu0
    %v1340 = vadd.f32 %v1256, %v1278
    %v1341 = vadd.f32 %v1257, %v1298
    %v1342 = vadd.f32 %v1258, %v1318
    %v1343 = vadd.f32 %v1259, %v1338
    %v1344 = vxor.u32 %v1340, 2147483648
    %v1345 = vxor.u32 %v1341, 2147483648
    %v1346 = vxor.u32 %v1342, 2147483648
    %v1347 = vmul.f32 %v1344, 1.442695
    %v1348 = vpow.pop %v1347
    %v1349 = vmul.f32 %v1345, 1.442695
    %v1350 = vpow.pop %v1349
    %v1351 = vmul.f32 %v1346, 1.442695
    %v1352 = vpow.pop %v1351
    %v1353 = vadd.f32 %v1348, 1.0
    %v1354 = vadd.f32 %v1350, 1.0
    %v1355 = vadd.f32 %v1352, 1.0
    %v1356 = vrcp.pop %v1353
    %v1357 = vmul.f32 %v1353, %v1356
    %v1358 = vsub.f32 1.0, %v1357
    %v1359 = vmul.f32 %v1356, %v1358
    %v1360 = vadd.f32 %v1356, %v1359
    %vm1361 = vweird.f32 %v1353
    %vm1362 = vweird.f32 %v1356
    %vm1363 = vmor %vm1361, %vm1362
    %v1364 = vsel %vm1363, %v1356, %v1360
    %v1365 = vand.u32 2147483647, %v1353
    %vm1366 = vcmp.eq.f32.partialorder %v1365, 8.507059e+37
    %v1367 = vand.u32 %v1353, 2147483648
    %v1368 = vor.u32 1.1754944e-38, %v1367
    %v1369 = vsel %vm1366, %v1368, %v1364
    %v1370 = vmul.f32 1.0, %v1369
    %v1371 = vrcp.pop %v1354
    %v1372 = vmul.f32 %v1354, %v1371
    %v1373 = vsub.f32 1.0, %v1372
    %v1374 = vmul.f32 %v1371, %v1373
    %v1375 = vadd.f32 %v1371, %v1374
    %vm1376 = vweird.f32 %v1354
    %vm1377 = vweird.f32 %v1371
    %vm1378 = vmor %vm1376, %vm1377
    %v1379 = vsel %vm1378, %v1371, %v1375
    %v1380 = vand.u32 2147483647, %v1354
    %vm1381 = vcmp.eq.f32.partialorder %v1380, 8.507059e+37
    %v1382 = vand.u32 %v1354, 2147483648
    %v1383 = vor.u32 1.1754944e-38, %v1382
    %v1384 = vsel %vm1381, %v1383, %v1379
    %v1385 = vmul.f32 1.0, %v1384
    %v1386 = vrcp.pop %v1355
    %v1387 = vmul.f32 %v1355, %v1386
    %v1388 = vsub.f32 1.0, %v1387
    %v1389 = vmul.f32 %v1386, %v1388
    %v1390 = vadd.f32 %v1386, %v1389
    %vm1391 = vweird.f32 %v1355
    %vm1392 = vweird.f32 %v1386
    %vm1393 = vmor %vm1391, %vm1392
    %v1394 = vsel %vm1393, %v1386, %v1390
    %v1395 = vand.u32 2147483647, %v1355
    %vm1396 = vcmp.eq.f32.partialorder %v1395, 8.507059e+37
    %v1397 = vand.u32 %v1355, 2147483648
    %v1398 = vor.u32 1.1754944e-38, %v1397
    %v1399 = vsel %vm1396, %v1398, %v1394
    %v1400 = vmul.f32 1.0, %v1399
    %v1401 = vtanh.pop %v1343
    %v1402 = vmul.f32 %v1385, %v1253
    %v1403 = vmul.f32 %v1370, %v1401
    %v1404 = vadd.f32 %v1402, %v1403
    %v1405 = vtanh.pop %v1404
    %v1406 = vmul.f32 %v1400, %v1405
    %v1407 = vld [vmem:[#allocation2 + $0xe0] sm:$0xff]
    %v1408 = vld [vmem:[#allocation2 + $0xe8] sm:$0xff]
    %v1409 = vld [vmem:[#allocation2 + $0xf0] sm:$0xff]
    %v1410 = vld [vmem:[#allocation2 + $0xf8] sm:$0xff]
    %1411 = vmatpush.msra.mxu0 %v350
    %1412 = vmatpush.msra.mxu0 %v346
    %1413 = vmatpush.msra.mxu0 %v342
    %1414 = vmatpush.msra.mxu0 %v338
    %1415 = vmatpush.msra.mxu0 %v334
    %1416 = vmatpush.msra.mxu0 %v330
    %1417 = vmatpush.msra.mxu0 %v326
    %1418 = vmatpush.msra.mxu0 %v322
    %1419 = vmatpush.msra.mxu0 %v318
    %1420 = vmatpush.msra.mxu0 %v314
    %1421 = vmatpush.msra.mxu0 %v310
    %1422 = vmatpush.msra.mxu0 %v306
    %1423 = vmatpush.msra.mxu0 %v302
    %1424 = vmatpush.msra.mxu0 %v298
    %1425 = vmatpush.msra.mxu0 %v294
    %1426 = vmatpush.msra.mxu0 %v290
    %1427 = vmatmul.f32.gmra.mxu0 %v1406
    %v1428 = vpop.f32.mrf.mxu0
    %v1429 = vadd.f32 0.0, %v1428
    %1430 = vdwg.mxu0
    %1431 = vmatpush.msra.mxu0 %v351
    %1432 = vmatpush.msra.mxu0 %v347
    %1433 = vmatpush.msra.mxu0 %v343
    %1434 = vmatpush.msra.mxu0 %v339
    %1435 = vmatpush.msra.mxu0 %v335
    %1436 = vmatpush.msra.mxu0 %v331
    %1437 = vmatpush.msra.mxu0 %v327
    %1438 = vmatpush.msra.mxu0 %v323
    %1439 = vmatpush.msra.mxu0 %v319
    %1440 = vmatpush.msra.mxu0 %v315
    %1441 = vmatpush.msra.mxu0 %v311
    %1442 = vmatpush.msra.mxu0 %v307
    %1443 = vmatpush.msra.mxu0 %v303
    %1444 = vmatpush.msra.mxu0 %v299
    %1445 = vmatpush.msra.mxu0 %v295
    %1446 = vmatpush.msra.mxu0 %v291
    %1447 = vmatmul.f32.gmra.mxu0 %v1406
    %v1448 = vpop.f32.mrf.mxu0
    %v1449 = vadd.f32 0.0, %v1448
    %1450 = vdwg.mxu0
    %1451 = vmatpush.msra.mxu0 %v352
    %1452 = vmatpush.msra.mxu0 %v348
    %1453 = vmatpush.msra.mxu0 %v344
    %1454 = vmatpush.msra.mxu0 %v340
    %1455 = vmatpush.msra.mxu0 %v336
    %1456 = vmatpush.msra.mxu0 %v332
    %1457 = vmatpush.msra.mxu0 %v328
    %1458 = vmatpush.msra.mxu0 %v324
    %1459 = vmatpush.msra.mxu0 %v320
    %1460 = vmatpush.msra.mxu0 %v316
    %1461 = vmatpush.msra.mxu0 %v312
    %1462 = vmatpush.msra.mxu0 %v308
    %1463 = vmatpush.msra.mxu0 %v304
    %1464 = vmatpush.msra.mxu0 %v300
    %1465 = vmatpush.msra.mxu0 %v296
    %1466 = vmatpush.msra.mxu0 %v292
    %1467 = vmatmul.f32.gmra.mxu0 %v1406
    %v1468 = vpop.f32.mrf.mxu0
    %v1469 = vadd.f32 0.0, %v1468
    %1470 = vdwg.mxu0
    %1471 = vmatpush.msra.mxu0 %v353
    %1472 = vmatpush.msra.mxu0 %v349
    %1473 = vmatpush.msra.mxu0 %v345
    %1474 = vmatpush.msra.mxu0 %v341
    %1475 = vmatpush.msra.mxu0 %v337
    %1476 = vmatpush.msra.mxu0 %v333
    %1477 = vmatpush.msra.mxu0 %v329
    %1478 = vmatpush.msra.mxu0 %v325
    %1479 = vmatpush.msra.mxu0 %v321
    %1480 = vmatpush.msra.mxu0 %v317
    %1481 = vmatpush.msra.mxu0 %v313
    %1482 = vmatpush.msra.mxu0 %v309
    %1483 = vmatpush.msra.mxu0 %v305
    %1484 = vmatpush.msra.mxu0 %v301
    %1485 = vmatpush.msra.mxu0 %v297
    %1486 = vmatpush.msra.mxu0 %v293
    %1487 = vmatmul.f32.gmra.mxu0 %v1406
    %v1488 = vpop.f32.mrf.mxu0
    %v1489 = vadd.f32 0.0, %v1488
    %1490 = vdwg.mxu0
    %v1491 = vadd.f32 %v1407, %v1429
    %v1492 = vadd.f32 %v1408, %v1449
    %v1493 = vadd.f32 %v1409, %v1469
    %v1494 = vadd.f32 %v1410, %v1489
    %v1495 = vxor.u32 %v1491, 2147483648
    %v1496 = vxor.u32 %v1492, 2147483648
    %v1497 = vxor.u32 %v1493, 2147483648
    %v1498 = vmul.f32 %v1495, 1.442695
    %v1499 = vpow.pop %v1498
    %v1500 = vmul.f32 %v1496, 1.442695
    %v1501 = vpow.pop %v1500
    %v1502 = vmul.f32 %v1497, 1.442695
    %v1503 = vpow.pop %v1502
    %v1504 = vadd.f32 %v1499, 1.0
    %v1505 = vadd.f32 %v1501, 1.0
    %v1506 = vadd.f32 %v1503, 1.0
    %v1507 = vrcp.pop %v1504
    %v1508 = vmul.f32 %v1504, %v1507
    %v1509 = vsub.f32 1.0, %v1508
    %v1510 = vmul.f32 %v1507, %v1509
    %v1511 = vadd.f32 %v1507, %v1510
    %vm1512 = vweird.f32 %v1504
    %vm1513 = vweird.f32 %v1507
    %vm1514 = vmor %vm1512, %vm1513
    %v1515 = vsel %vm1514, %v1507, %v1511
    %v1516 = vand.u32 2147483647, %v1504
    %vm1517 = vcmp.eq.f32.partialorder %v1516, 8.507059e+37
    %v1518 = vand.u32 %v1504, 2147483648
    %v1519 = vor.u32 1.1754944e-38, %v1518
    %v1520 = vsel %vm1517, %v1519, %v1515
    %v1521 = vmul.f32 1.0, %v1520
    %v1522 = vrcp.pop %v1505
    %v1523 = vmul.f32 %v1505, %v1522
    %v1524 = vsub.f32 1.0, %v1523
    %v1525 = vmul.f32 %v1522, %v1524
    %v1526 = vadd.f32 %v1522, %v1525
    %vm1527 = vweird.f32 %v1505
    %vm1528 = vweird.f32 %v1522
    %vm1529 = vmor %vm1527, %vm1528
    %v1530 = vsel %vm1529, %v1522, %v1526
    %v1531 = vand.u32 2147483647, %v1505
    %vm1532 = vcmp.eq.f32.partialorder %v1531, 8.507059e+37
    %v1533 = vand.u32 %v1505, 2147483648
    %v1534 = vor.u32 1.1754944e-38, %v1533
    %v1535 = vsel %vm1532, %v1534, %v1530
    %v1536 = vmul.f32 1.0, %v1535
    %v1537 = vrcp.pop %v1506
    %v1538 = vmul.f32 %v1506, %v1537
    %v1539 = vsub.f32 1.0, %v1538
    %v1540 = vmul.f32 %v1537, %v1539
    %v1541 = vadd.f32 %v1537, %v1540
    %vm1542 = vweird.f32 %v1506
    %vm1543 = vweird.f32 %v1537
    %vm1544 = vmor %vm1542, %vm1543
    %v1545 = vsel %vm1544, %v1537, %v1541
    %v1546 = vand.u32 2147483647, %v1506
    %vm1547 = vcmp.eq.f32.partialorder %v1546, 8.507059e+37
    %v1548 = vand.u32 %v1506, 2147483648
    %v1549 = vor.u32 1.1754944e-38, %v1548
    %v1550 = vsel %vm1547, %v1549, %v1545
    %v1551 = vmul.f32 1.0, %v1550
    %v1552 = vtanh.pop %v1494
    %v1553 = vmul.f32 %v1536, %v1404
    %v1554 = vmul.f32 %v1521, %v1552
    %v1555 = vadd.f32 %v1553, %v1554
    %v1556 = vtanh.pop %v1555
    %v1557 = vmul.f32 %v1551, %v1556
    %v1558 = vld [vmem:[%s4] sm:$0xff]
    %v1559 = vld [vmem:[%s4 + $0x8] sm:$0xff]
    %v1560 = vld [vmem:[%s4 + $0x10] sm:$0xff]
    %v1561 = vld [vmem:[%s4 + $0x18] sm:$0xff]
    %v1562 = vld [vmem:[%s4 + $0x20] sm:$0xff]
    %v1563 = vld [vmem:[%s4 + $0x28] sm:$0xff]
    %v1564 = vld [vmem:[%s4 + $0x30] sm:$0xff]
    %v1565 = vld [vmem:[%s4 + $0x38] sm:$0xff]
    %v1566 = vld [vmem:[%s4 + $0x40] sm:$0xff]
    %v1567 = vld [vmem:[%s4 + $0x48] sm:$0xff]
    %v1568 = vld [vmem:[%s4 + $0x50] sm:$0xff]
    %v1569 = vld [vmem:[%s4 + $0x58] sm:$0xff]
    %v1570 = vld [vmem:[%s4 + $0x60] sm:$0xff]
    %v1571 = vld [vmem:[%s4 + $0x68] sm:$0xff]
    %v1572 = vld [vmem:[%s4 + $0x70] sm:$0xff]
    %v1573 = vld [vmem:[%s4 + $0x78] sm:$0xff]
    %v1574 = vld [vmem:[%s5] sm:$0x1]
    %v1576 = vperm.slane %v1574, 0
    %1578 = vmatpush.msra.mxu0 %v1573
    %1579 = vmatpush.msra.mxu0 %v1572
    %1580 = vmatpush.msra.mxu0 %v1571
    %1581 = vmatpush.msra.mxu0 %v1570
    %1582 = vmatpush.msra.mxu0 %v1569
    %1583 = vmatpush.msra.mxu0 %v1568
    %1584 = vmatpush.msra.mxu0 %v1567
    %1585 = vmatpush.msra.mxu0 %v1566
    %1586 = vmatpush.msra.mxu0 %v1565
    %1587 = vmatpush.msra.mxu0 %v1564
    %1588 = vmatpush.msra.mxu0 %v1563
    %1589 = vmatpush.msra.mxu0 %v1562
    %1590 = vmatpush.msra.mxu0 %v1561
    %1591 = vmatpush.msra.mxu0 %v1560
    %1592 = vmatpush.msra.mxu0 %v1559
    %1593 = vmatpush.msra.mxu0 %v1558
    %1594 = vmatmul.f32.gmra.mxu0 %v1557
    %v1595 = vpop.f32.mrf.mxu0
    %v1596 = vadd.f32 %v1576, %v1595
    %1597 = vdwg.mxu0
    %vm1598 = vcmask 23552
    %1599 = vst.msk [vmem:[%s6] sm:$0xff] %vm1598, %v1596
    // Predicated region
    $region30: #{_forward_jit.1} parent=1 // pred_check
      _
    $region31: #{_forward_jit.1} parent=1 // pred_check_branch
      %1601 = sbr.rel (0) target = $region33
    $region32: #{_forward_jit.1} parent=1 // pred_region
      _
    $region33: #{_forward_jit.1} parent=1 // pred_fallthru
      _
    // Predicated region
    $region34: #{_forward_jit.1} parent=1 // pred_check
      _
    $region35: #{_forward_jit.1} parent=1 // pred_check_branch
      %1603 = sbr.rel (0) target = $region37
    $region36: #{_forward_jit.1} parent=1 // pred_region
      _
    $region37: #{_forward_jit.1} parent=1 // pred_fallthru
      _
    %1604 = vsyncpa [#allocation4], 1

</llo_original>
